<compile_context>
chip_gen: v6e
topology: v6e:2x2x1
jax: 0.10.0
libtpu: 0.0.40
codegen_flags: <defaults>
</compile_context>

<pallas_src>
import jax
import jax.numpy as jnp
from jax.experimental import pallas as pl
from jax.experimental.pallas import tpu as pltpu


def _attention_gru_cell_kernel(
    # ---- inputs (blocked views) ----
    bh_ref,       # (Bb, bt, I)   batch_H tile (activation dtype, streamed)
    hproj_ref,    # (Bb, 1, H)    h2h(prev_hidden)+bias, precomputed, f32
    h_ref,        # (Bb, H)       prev_hidden rows
    oh_ref,       # (Bb, E)       char_onehots rows
    i2h_wT_ref,   # (I, H)        i2h.weight^T            (activation dtype)
    score_w_ref,  # (1, 1, H)     score.weight             (activation dtype)
    wih_ref,      # (I+E, 3H)     GRU w_ih^T, gates fused (r|z|n) (act dtype)
    whh_ref,      # (H, 3H)       GRU w_hh^T, gates fused          (act dtype)
    bih_ref,      # (1, 3H)       GRU bias_ih (f32)
    bhh_ref,      # (1, 3H)       GRU bias_hh (f32)
    # ---- outputs ----
    h_out_ref,    # (Bb, H)
    alpha_ref,    # (Bb, 1, T)    f32, T on lanes; resident across the t axis
    # ---- VMEM scratch (persists across grid steps) ----
    e_scr,        # (n_t, Bb, 1, bt) f32  raw scores, lane-dense per tile
    m_scr,        # (Bb, 1, 1) f32        running max
    l_scr,        # (Bb, 1, 1) f32        running softmax denominator
    ctx_scr,      # (Bb, 1, I) f32        running (max-shifted) context numerator
):
    t = pl.program_id(1)
    n_t = e_scr.shape[0]                       # static
    Bb, bt, I = bh_ref.shape                   # static
    H = hproj_ref.shape[-1]

    @pl.when(t == 0)
    def _init():
        m_scr[...] = jnp.full(m_scr.shape, -jnp.inf, dtype=jnp.float32)
        l_scr[...] = jnp.zeros(l_scr.shape, dtype=jnp.float32)
        ctx_scr[...] = jnp.zeros(ctx_scr.shape, dtype=jnp.float32)

    # ---------------- attention scores for this T tile ----------------
    bh3 = bh_ref[...]                                              # (Bb, bt, I)
    # one big sublane-dense matmul: (Bb*bt, I) @ (I, H)
    proj = jnp.dot(bh3.reshape(Bb * bt, I), i2h_wT_ref[...],
                   preferred_element_type=jnp.float32)             # (Bb*bt, H)
    res3 = jnp.tanh(proj.reshape(Bb, bt, H) + hproj_ref[...])      # (Bb, bt, H) f32
    # score Linear(H,1) as an MXU contraction with T landing on LANES:
    # (Bb,1,H) x (Bb,bt,H) -> (Bb,1,bt)  (flash-attention 'bqd,bkd->bqk' shape)
    score_b = jnp.broadcast_to(score_w_ref[...], (Bb, 1, H))
    e3 = jnp.einsum('bqh,bth->bqt', score_b, res3.astype(score_b.dtype),
                    preferred_element_type=jnp.float32)            # (Bb, 1, bt)
    e_scr[t] = e3                                                  # lane-dense store

    # ---------- online softmax stats + running context numerator ----------
    m_prev = m_scr[...]                                            # (Bb, 1, 1)
    m_new = jnp.maximum(m_prev, jnp.max(e3, axis=-1, keepdims=True))
    corr = jnp.exp(m_prev - m_new)                                 # 0.0 at t == 0
    p3 = jnp.exp(e3 - m_new)                                       # (Bb, 1, bt)
    l_scr[...] = l_scr[...] * corr + jnp.sum(p3, axis=-1, keepdims=True)
    # context numerator on the MXU: (Bb,1,bt) @ (Bb,bt,I) -> (Bb,1,I)
    ctx_scr[...] = ctx_scr[...] * corr + jnp.einsum(
        'bqt,bti->bqi', p3.astype(bh3.dtype), bh3,
        preferred_element_type=jnp.float32)
    m_scr[...] = m_new

    # ---------- finalize: normalize softmax, one fused GRU cell step ----------
    # NOTE: h_out/alpha blocks have a constant index along the "arbitrary" t
    # axis, so they stay resident and are written back when the batch block
    # changes (same semantics as the previously validated kernel).
    @pl.when(t == n_t - 1)
    def _finalize():
        l = l_scr[...]
        inv_l = pl.reciprocal(l, approx=True)                      # EUP rcp
        inv_l = inv_l * (2.0 - l * inv_l)                          # Newton -> ~f32
        m_fin = m_scr[...]

        # alpha written lane-dense at static (multiple-of-bt) lane offsets.
        for j in range(n_t):                                       # static unroll
            alpha_ref[:, :, j * bt:(j + 1) * bt] = (
                jnp.exp(e_scr[j] - m_fin) * inv_l).astype(alpha_ref.dtype)

        ctx3 = ctx_scr[...] * inv_l                                # (Bb, 1, I)
        # gather the Bb per-row vregs onto sublanes -> (Bb, I)
        ctx2 = jnp.concatenate([ctx3[b] for b in range(Bb)], axis=0)

        w_dt = wih_ref.dtype
        x = jnp.concatenate(
            [ctx2.astype(w_dt), oh_ref[...].astype(w_dt)], axis=-1)  # (Bb, I+E)
        h_prev = h_ref[...].astype(jnp.float32)                      # (Bb, H)

        # fused gate matmuls: 2 MXU pushes, output lane width 3H.
        gi = jnp.dot(x, wih_ref[...],
                     preferred_element_type=jnp.float32) + bih_ref[...]   # (Bb, 3H)
        gh = jnp.dot(h_ref[...].astype(w_dt), whh_ref[...],
                     preferred_element_type=jnp.float32) + bhh_ref[...]   # (Bb, 3H)
        r = jax.nn.sigmoid(gi[:, :H] + gh[:, :H])
        z = jax.nn.sigmoid(gi[:, H:2 * H] + gh[:, H:2 * H])
        n = jnp.tanh(gi[:, 2 * H:] + r * gh[:, 2 * H:])
        h_new = (1.0 - z) * n + z * h_prev                                # (Bb, H)
        h_out_ref[...] = h_new.astype(h_out_ref.dtype)


def prepare_params(params, param_dtype=jnp.float32):
    """One-time parameter prep: transpose / gate-fuse / cast (no per-call work).

    All MXU-facing weights are stored in `param_dtype` (use bf16 with bf16
    activations); biases and the wrapper-side h2h weights stay f32.
    """
    f32 = jnp.float32
    i2h_w = jnp.asarray(params["i2h_w"])        # (H, I)
    h2h_w = jnp.asarray(params["h2h_w"])        # (H, H)
    h2h_b = jnp.asarray(params["h2h_b"])        # (H,)
    score_w = jnp.asarray(params["score_w"])    # (1, H)
    w_ih = jnp.asarray(params["gru_w_ih"])      # (3H, I+E)  gate order (r, z, n)
    w_hh = jnp.asarray(params["gru_w_hh"])      # (3H, H)
    b_ih = jnp.asarray(params["gru_b_ih"])      # (3H,)
    b_hh = jnp.asarray(params["gru_b_hh"])      # (3H,)

    H = i2h_w.shape[0]
    return {
        "i2h_wT": i2h_w.T.astype(param_dtype),                  # (I, H)
        "h2h_wT": h2h_w.T.astype(f32),                          # (H, H)  wrapper-side
        "h2h_b": h2h_b.reshape(1, H).astype(f32),               # (1, H)  wrapper-side
        "score_w": score_w.reshape(1, 1, H).astype(param_dtype),# (1, 1, H)
        "w_ih_T": w_ih.T.astype(param_dtype),                   # (I+E, 3H) fused gates
        "w_hh_T": w_hh.T.astype(param_dtype),                   # (H, 3H)   fused gates
        "b_ih": b_ih.reshape(1, 3 * H).astype(f32),             # (1, 3H)
        "b_hh": b_hh.reshape(1, 3 * H).astype(f32),             # (1, 3H)
    }


def _pick_block_t(T, want):
    """Largest tile <= `want` that divides T; prefer 128-multiples, then 8."""
    want = max(8, min(want, T))
    for m in (128, 8):
        c = (want // m) * m
        while c >= m:
            if T % c == 0:
                return c
            c -= m
    # TODO(synk): pad/mask ragged T instead of a whole-T tile (VMEM risk on v7x).
    return T


def attention_gru_cell(prev_hidden, batch_H, char_onehots, prepared, *,
                       block_t=512, block_b=8):
    """Pallas AttentionGRUCell.forward.

    Returns ((output, h_n), alpha) with output == h_n == new hidden (B, H) and
    alpha of shape (B, 1, T) (torch's alpha.permute(0, 2, 1))."""
    B, T, I = batch_H.shape
    H = prev_hidden.shape[-1]
    E = char_onehots.shape[-1]
    IE = I + E

    Bb = block_b if (B % block_b == 0) else B
    bt = _pick_block_t(T, block_t)
    n_t = T // bt

    # T-invariant h2h projection hoisted out of the kernel (tiny batched matmul).
    hproj = (prev_hidden.astype(jnp.float32) @ prepared["h2h_wT"]
             + prepared["h2h_b"]).reshape(B, 1, H)

    grid = (B // Bb, n_t)
    in_specs = [
        pl.BlockSpec((Bb, bt, I), lambda b, t: (b, t, 0)),    # batch_H (streamed)
        pl.BlockSpec((Bb, 1, H), lambda b, t: (b, 0, 0)),     # hproj
        pl.BlockSpec((Bb, H), lambda b, t: (b, 0)),           # prev_hidden
        pl.BlockSpec((Bb, E), lambda b, t: (b, 0)),           # char_onehots
        # weights: constant block index -> resident in VMEM
        pl.BlockSpec((I, H), lambda b, t: (0, 0)),            # i2h_wT
        pl.BlockSpec((1, 1, H), lambda b, t: (0, 0, 0)),      # score_w
        pl.BlockSpec((IE, 3 * H), lambda b, t: (0, 0)),       # w_ih_T (fused)
        pl.BlockSpec((H, 3 * H), lambda b, t: (0, 0)),        # w_hh_T (fused)
        pl.BlockSpec((1, 3 * H), lambda b, t: (0, 0)),        # b_ih
        pl.BlockSpec((1, 3 * H), lambda b, t: (0, 0)),        # b_hh
    ]
    out_specs = (
        pl.BlockSpec((Bb, H), lambda b, t: (b, 0)),           # h_out
        pl.BlockSpec((Bb, 1, T), lambda b, t: (b, 0, 0)),     # alpha, lane-dense
    )
    out_shape = (
        jax.ShapeDtypeStruct((B, H), prev_hidden.dtype),
        jax.ShapeDtypeStruct((B, 1, T), jnp.float32),
    )
    scratch_shapes = [
        pltpu.VMEM((n_t, Bb, 1, bt), jnp.float32),   # e_scr (raw scores)
        pltpu.VMEM((Bb, 1, 1), jnp.float32),         # m_scr
        pltpu.VMEM((Bb, 1, 1), jnp.float32),         # l_scr
        pltpu.VMEM((Bb, 1, I), jnp.float32),         # ctx_scr
    ]

    h_out, alpha = pl.pallas_call(
        _attention_gru_cell_kernel,
        out_shape=out_shape,
        grid=grid,
        in_specs=in_specs,
        out_specs=out_specs,
        scratch_shapes=scratch_shapes,
        compiler_params=pltpu.CompilerParams(
            dimension_semantics=("parallel", "arbitrary")),
    )(batch_H, hproj, prev_hidden, char_onehots,
      prepared["i2h_wT"], prepared["score_w"],
      prepared["w_ih_T"], prepared["w_hh_T"],
      prepared["b_ih"], prepared["b_hh"])

    # nn.GRU over a length-1 sequence returns (output, h_n); both equal new hidden.
    return (h_out, h_out), alpha


def _reference(prev_hidden, batch_H, char_onehots, p):
    """Pure-JAX reference mirroring the PyTorch forward math (f32)."""
    proj = batch_H @ p["i2h_w"].T
    hproj = prev_hidden @ p["h2h_w"].T + p["h2h_b"]
    res = jnp.tanh(proj + hproj[:, None, :])
    e = res @ p["score_w"].T                         # (B, T, 1)
    alpha = jax.nn.softmax(e, axis=1)
    alpha = jnp.transpose(alpha, (0, 2, 1))          # (B, 1, T)
    context = jnp.squeeze(alpha @ batch_H, axis=1)   # (B, I)
    x = jnp.concatenate([context, char_onehots], axis=1)
    gi = x @ p["gru_w_ih"].T + p["gru_b_ih"]
    gh = prev_hidden @ p["gru_w_hh"].T + p["gru_b_hh"]
    H = prev_hidden.shape[-1]
    i_r, i_z, i_n = gi[:, :H], gi[:, H:2 * H], gi[:, 2 * H:]
    h_r, h_z, h_n = gh[:, :H], gh[:, H:2 * H], gh[:, 2 * H:]
    r = jax.nn.sigmoid(i_r + h_r)
    z = jax.nn.sigmoid(i_z + h_z)
    n = jnp.tanh(i_n + r * h_n)
    h_new = (1.0 - z) * n + z * prev_hidden
    return h_new, alpha


def _make_inputs(key, B, T, I, H, E):
    ks = jax.random.split(key, 3)
    prev_hidden = jax.random.normal(ks[0], (B, H), jnp.float32)
    batch_H = jax.random.normal(ks[1], (B, T, I), jnp.float32)
    char_ids = jax.random.randint(ks[2], (B,), 0, E)
    char_onehots = jax.nn.one_hot(char_ids, E, dtype=jnp.float32)
    return prev_hidden, batch_H, char_onehots


if __name__ == "__main__":
    key = jax.random.PRNGKey(0)
    # batch, seq, input_size, hidden_size, num_embedding
    B, T, I, H, E = 2, 256, 32, 32, 8
    kp, kx, kx2 = jax.random.split(key, 3)

    def init(k, shape, scale=0.1):
        return (scale * jax.random.normal(k, shape)).astype(jnp.float32)

    ks = jax.random.split(kp, 8)
    params = {
        "i2h_w": init(ks[0], (H, I)),
        "h2h_w": init(ks[1], (H, H)),
        "h2h_b": init(ks[2], (H,)),
        "score_w": init(ks[3], (1, H)),
        "gru_w_ih": init(ks[4], (3 * H, I + E)),
        "gru_w_hh": init(ks[5], (3 * H, H)),
        "gru_b_ih": init(ks[6], (3 * H,)),
        "gru_b_hh": init(ks[7], (3 * H,)),
    }

    prev_hidden, batch_H, char_onehots = _make_inputs(kx, B, T, I, H, E)
    ref_h, ref_alpha = _reference(prev_hidden, batch_H, char_onehots, params)

    # --- f32, block_t=128 -> n_t=2: exercises the multi-tile online softmax ---
    prep_f32 = prepare_params(params, jnp.float32)
    (out, h_n), alpha = attention_gru_cell(
        prev_hidden, batch_H, char_onehots, prep_f32, block_t=128)
    jax.block_until_ready((out, h_n, alpha))
    assert out.shape == (B, H) and h_n.shape == (B, H) and alpha.shape == (B, 1, T)
    assert jnp.allclose(out, ref_h, atol=1e-4, rtol=1e-4)
    assert jnp.allclose(alpha, ref_alpha, atol=1e-4, rtol=1e-4)

    # --- bf16 activations + bf16 weights, default block_t (single tile) ------
    prep_bf16 = prepare_params(params, jnp.bfloat16)
    (out_bf, _), alpha_bf = attention_gru_cell(
        prev_hidden.astype(jnp.bfloat16),
        batch_H.astype(jnp.bfloat16),
        char_onehots.astype(jnp.bfloat16),
        prep_bf16)
    jax.block_until_ready((out_bf, alpha_bf))
    assert jnp.allclose(out_bf.astype(jnp.float32), ref_h, atol=5e-2, rtol=5e-2)
    assert jnp.allclose(alpha_bf, ref_alpha, atol=5e-2, rtol=5e-2)

    # --- B=8: exercises the sublane-dense batch-blocked path (Bb=8) ----------
    B2, T2 = 8, 128
    ph2, bh2, oh2 = _make_inputs(kx2, B2, T2, I, H, E)
    ref_h2, ref_alpha2 = _reference(ph2, bh2, oh2, params)
    (out2, _), alpha2 = attention_gru_cell(ph2, bh2, oh2, prep_f32)
    jax.block_until_ready((out2, alpha2))
    assert out2.shape == (B2, H) and alpha2.shape == (B2, 1, T2)
    assert jnp.allclose(out2, ref_h2, atol=1e-4, rtol=1e-4)
    assert jnp.allclose(alpha2, ref_alpha2, atol=1e-4, rtol=1e-4)

    print("KERNEL_OK")
</pallas_src>

<mosaic_0001>
module attributes {stable_mosaic.version = 11 : i64} {
  func.func @_attention_gru_cell_kernel(%arg0: i32, %arg1: i32, %arg2: memref<2x128x32xf32, #tpu.memory_space<vmem>>, %arg3: memref<2x1x32xf32, #tpu.memory_space<vmem>>, %arg4: memref<2x32xf32, #tpu.memory_space<vmem>>, %arg5: memref<2x8xf32, #tpu.memory_space<vmem>>, %arg6: memref<32x32xf32, #tpu.memory_space<vmem>>, %arg7: memref<1x1x32xf32, #tpu.memory_space<vmem>>, %arg8: memref<40x96xf32, #tpu.memory_space<vmem>>, %arg9: memref<32x96xf32, #tpu.memory_space<vmem>>, %arg10: memref<1x96xf32, #tpu.memory_space<vmem>>, %arg11: memref<1x96xf32, #tpu.memory_space<vmem>>, %arg12: memref<2x32xf32, #tpu.memory_space<vmem>>, %arg13: memref<2x1x256xf32, #tpu.memory_space<vmem>>, %arg14: memref<2x2x1x128xf32, #tpu.memory_space<vmem>>, %arg15: memref<2x1x1xf32, #tpu.memory_space<vmem>>, %arg16: memref<2x1x1xf32, #tpu.memory_space<vmem>>, %arg17: memref<2x1x32xf32, #tpu.memory_space<vmem>>) attributes {dimension_semantics = [#tpu.dimension_semantics<parallel>, #tpu.dimension_semantics<arbitrary>], iteration_bounds = array<i64: 1, 2>, scalar_prefetch = 0 : i64, scratch_operands = 4 : i64, tpu.core_type = #tpu.core_type<tc>, window_params = [{transform_indices = @transform_0, window_bounds = array<i64: 2, 128, 32>}, {transform_indices = @transform_1, window_bounds = array<i64: 2, 1, 32>}, {transform_indices = @transform_2, window_bounds = array<i64: 2, 32>}, {transform_indices = @transform_3, window_bounds = array<i64: 2, 8>}, {pipeline_mode = #tpu.pipeline_mode<synchronous>, transform_indices = @transform_4, window_bounds = array<i64: 32, 32>}, {pipeline_mode = #tpu.pipeline_mode<synchronous>, transform_indices = @transform_5, window_bounds = array<i64: 1, 1, 32>}, {pipeline_mode = #tpu.pipeline_mode<synchronous>, transform_indices = @transform_6, window_bounds = array<i64: 40, 96>}, {pipeline_mode = #tpu.pipeline_mode<synchronous>, transform_indices = @transform_7, window_bounds = array<i64: 32, 96>}, {pipeline_mode = #tpu.pipeline_mode<synchronous>, transform_indices = @transform_8, window_bounds = array<i64: 1, 96>}, {pipeline_mode = #tpu.pipeline_mode<synchronous>, transform_indices = @transform_9, window_bounds = array<i64: 1, 96>}, {transform_indices = @transform_10, window_bounds = array<i64: 2, 32>}, {transform_indices = @transform_11, window_bounds = array<i64: 2, 1, 256>}]} {
    %c0_i32 = arith.constant 0 : i32
    %0 = arith.cmpi eq, %arg1, %c0_i32 : i32
    %1 = arith.extui %0 : i1 to i32
    %c0_i32_0 = arith.constant 0 : i32
    %2 = arith.cmpi ne, %1, %c0_i32_0 : i32
    scf.if %2 {
      %cst_37 = arith.constant 0xFF800000 : f32
      %45 = vector.broadcast %cst_37 : f32 to vector<2x1x1xf32>
      %c0_38 = arith.constant 0 : index
      %c0_39 = arith.constant 0 : index
      %c0_40 = arith.constant 0 : index
      %46 = vector.load %arg15[%c0_38, %c0_39, %c0_40] : memref<2x1x1xf32, #tpu.memory_space<vmem>>, vector<2x1x1xf32>
      tpu.vector_store %arg15[%c0_38, %c0_39, %c0_40], %45 {strides = array<i32>} : memref<2x1x1xf32, #tpu.memory_space<vmem>>, vector<2x1x1xf32>,
      %cst_41 = arith.constant 0.000000e+00 : f32
      %47 = vector.broadcast %cst_41 : f32 to vector<2x1x1xf32>
      %c0_42 = arith.constant 0 : index
      %c0_43 = arith.constant 0 : index
      %c0_44 = arith.constant 0 : index
      %48 = vector.load %arg16[%c0_42, %c0_43, %c0_44] : memref<2x1x1xf32, #tpu.memory_space<vmem>>, vector<2x1x1xf32>
      tpu.vector_store %arg16[%c0_42, %c0_43, %c0_44], %47 {strides = array<i32>} : memref<2x1x1xf32, #tpu.memory_space<vmem>>, vector<2x1x1xf32>,
      %cst_45 = arith.constant 0.000000e+00 : f32
      %49 = vector.broadcast %cst_45 : f32 to vector<2x1x32xf32>
      %c0_46 = arith.constant 0 : index
      %c0_47 = arith.constant 0 : index
      %c0_48 = arith.constant 0 : index
      %50 = vector.load %arg17[%c0_46, %c0_47, %c0_48] : memref<2x1x32xf32, #tpu.memory_space<vmem>>, vector<2x1x32xf32>
      tpu.vector_store %arg17[%c0_46, %c0_47, %c0_48], %49 {strides = array<i32>} : memref<2x1x32xf32, #tpu.memory_space<vmem>>, vector<2x1x32xf32>,
    } else {
    }
    %c0 = arith.constant 0 : index
    %c0_1 = arith.constant 0 : index
    %c0_2 = arith.constant 0 : index
    %3 = vector.load %arg2[%c0, %c0_1, %c0_2] : memref<2x128x32xf32, #tpu.memory_space<vmem>>, vector<2x128x32xf32>
    %4 = vector.shape_cast %3 : vector<2x128x32xf32> to vector<256x32xf32>
    %c0_3 = arith.constant 0 : index
    %c0_4 = arith.constant 0 : index
    %5 = vector.load %arg6[%c0_3, %c0_4] : memref<32x32xf32, #tpu.memory_space<vmem>>, vector<32x32xf32>
    %cst = arith.constant dense<0.000000e+00> : vector<256x32xf32>
    %6 = tpu.matmul %4, %5, %cst {dimension_numbers = #tpu.dot_dimension_numbers<[1], [0], [0], [1], [0, 0, 1, 1], [], []>} : vector<256x32xf32>, vector<32x32xf32>, vector<256x32xf32> -> vector<256x32xf32>
    %7 = vector.shape_cast %6 : vector<256x32xf32> to vector<2x128x32xf32>
    %c0_5 = arith.constant 0 : index
    %c0_6 = arith.constant 0 : index
    %c0_7 = arith.constant 0 : index
    %8 = vector.load %arg3[%c0_5, %c0_6, %c0_7] : memref<2x1x32xf32, #tpu.memory_space<vmem>>, vector<2x1x32xf32>
    %9 = vector.broadcast %8 : vector<2x1x32xf32> to vector<2x128x32xf32>
    %10 = arith.addf %7, %9 : vector<2x128x32xf32>
    %11 = math.tanh %10 : vector<2x128x32xf32>
    %c0_8 = arith.constant 0 : index
    %c0_9 = arith.constant 0 : index
    %c0_10 = arith.constant 0 : index
    %12 = vector.load %arg7[%c0_8, %c0_9, %c0_10] : memref<1x1x32xf32, #tpu.memory_space<vmem>>, vector<1x1x32xf32>
    %13 = vector.shape_cast %12 : vector<1x1x32xf32> to vector<1x1x32xf32>
    %14 = vector.broadcast %13 : vector<1x1x32xf32> to vector<2x1x32xf32>
    "tpu.trace_start"() <{level = 10 : i32, message = "bqh,bth->bqt"}> : () -> ()
    %cst_11 = arith.constant dense<0.000000e+00> : vector<2x1x128xf32>
    %15 = tpu.matmul %14, %11, %cst_11 {dimension_numbers = #tpu.dot_dimension_numbers<[2], [2], [1], [1], [0, 0, 0, 1, 1, 1], [0], [0]>} : vector<2x1x32xf32>, vector<2x128x32xf32>, vector<2x1x128xf32> -> vector<2x1x128xf32>
    "tpu.trace_stop"() : () -> ()
    %16 = arith.index_cast %arg1 : i32 to index
    %c0_12 = arith.constant 0 : index
    %c0_13 = arith.constant 0 : index
    %c0_14 = arith.constant 0 : index
    %17 = vector.load %arg14[%16, %c0_12, %c0_13, %c0_14] : memref<2x2x1x128xf32, #tpu.memory_space<vmem>>, vector<1x2x1x128xf32>
    %18 = vector.shape_cast %17 : vector<1x2x1x128xf32> to vector<2x1x128xf32>
    %19 = vector.shape_cast %15 : vector<2x1x128xf32> to vector<1x2x1x128xf32>
    tpu.vector_store %arg14[%16, %c0_12, %c0_13, %c0_14], %19 {strides = array<i32>} : memref<2x2x1x128xf32, #tpu.memory_space<vmem>>, vector<1x2x1x128xf32>,
    %c0_15 = arith.constant 0 : index
    %c0_16 = arith.constant 0 : index
    %c0_17 = arith.constant 0 : index
    %20 = vector.load %arg15[%c0_15, %c0_16, %c0_17] : memref<2x1x1xf32, #tpu.memory_space<vmem>>, vector<2x1x1xf32>
    %cst_18 = arith.constant dense<0xFF800000> : vector<2x1xf32>
    %21 = vector.multi_reduction <maximumf>, %15, %cst_18 [2] : vector<2x1x128xf32> to vector<2x1xf32>
    %22 = vector.shape_cast %21 : vector<2x1xf32> to vector<2x1x1xf32>
    %23 = arith.maximumf %20, %22 : vector<2x1x1xf32>
    %24 = arith.subf %20, %23 : vector<2x1x1xf32>
    %25 = math.exp %24 : vector<2x1x1xf32>
    %26 = vector.broadcast %23 : vector<2x1x1xf32> to vector<2x1x128xf32>
    %27 = arith.subf %15, %26 : vector<2x1x128xf32>
    %28 = math.exp %27 : vector<2x1x128xf32>
    %c0_19 = arith.constant 0 : index
    %c0_20 = arith.constant 0 : index
    %c0_21 = arith.constant 0 : index
    %29 = vector.load %arg16[%c0_19, %c0_20, %c0_21] : memref<2x1x1xf32, #tpu.memory_space<vmem>>, vector<2x1x1xf32>
    %30 = arith.mulf %29, %25 : vector<2x1x1xf32>
    %cst_22 = arith.constant dense<0.000000e+00> : vector<2x1xf32>
    %31 = vector.multi_reduction <add>, %28, %cst_22 [2] : vector<2x1x128xf32> to vector<2x1xf32>
    %32 = vector.shape_cast %31 : vector<2x1xf32> to vector<2x1x1xf32>
    %33 = arith.addf %30, %32 : vector<2x1x1xf32>
    %c0_23 = arith.constant 0 : index
    %c0_24 = arith.constant 0 : index
    %c0_25 = arith.constant 0 : index
    %34 = vector.load %arg16[%c0_23, %c0_24, %c0_25] : memref<2x1x1xf32, #tpu.memory_space<vmem>>, vector<2x1x1xf32>
    tpu.vector_store %arg16[%c0_23, %c0_24, %c0_25], %33 {strides = array<i32>} : memref<2x1x1xf32, #tpu.memory_space<vmem>>, vector<2x1x1xf32>,
    %c0_26 = arith.constant 0 : index
    %c0_27 = arith.constant 0 : index
    %c0_28 = arith.constant 0 : index
    %35 = vector.load %arg17[%c0_26, %c0_27, %c0_28] : memref<2x1x32xf32, #tpu.memory_space<vmem>>, vector<2x1x32xf32>
    %36 = vector.broadcast %25 : vector<2x1x1xf32> to vector<2x1x32xf32>
    %37 = arith.mulf %35, %36 : vector<2x1x32xf32>
    "tpu.trace_start"() <{level = 10 : i32, message = "bqt,bti->bqi"}> : () -> ()
    %cst_29 = arith.constant dense<0.000000e+00> : vector<2x1x32xf32>
    %38 = tpu.matmul %28, %3, %cst_29 {dimension_numbers = #tpu.dot_dimension_numbers<[2], [1], [1], [2], [0, 0, 0, 1, 1, 2], [0], [0]>} : vector<2x1x128xf32>, vector<2x128x32xf32>, vector<2x1x32xf32> -> vector<2x1x32xf32>
    "tpu.trace_stop"() : () -> ()
    %39 = arith.addf %37, %38 : vector<2x1x32xf32>
    %c0_30 = arith.constant 0 : index
    %c0_31 = arith.constant 0 : index
    %c0_32 = arith.constant 0 : index
    %40 = vector.load %arg17[%c0_30, %c0_31, %c0_32] : memref<2x1x32xf32, #tpu.memory_space<vmem>>, vector<2x1x32xf32>
    tpu.vector_store %arg17[%c0_30, %c0_31, %c0_32], %39 {strides = array<i32>} : memref<2x1x32xf32, #tpu.memory_space<vmem>>, vector<2x1x32xf32>,
    %c0_33 = arith.constant 0 : index
    %c0_34 = arith.constant 0 : index
    %c0_35 = arith.constant 0 : index
    %41 = vector.load %arg15[%c0_33, %c0_34, %c0_35] : memref<2x1x1xf32, #tpu.memory_space<vmem>>, vector<2x1x1xf32>
    tpu.vector_store %arg15[%c0_33, %c0_34, %c0_35], %23 {strides = array<i32>} : memref<2x1x1xf32, #tpu.memory_space<vmem>>, vector<2x1x1xf32>,
    %c1_i32 = arith.constant 1 : i32
    %42 = arith.cmpi eq, %arg1, %c1_i32 : i32
    %43 = arith.extui %42 : i1 to i32
    %c0_i32_36 = arith.constant 0 : i32
    %44 = arith.cmpi ne, %43, %c0_i32_36 : i32
    scf.if %44 {
      %c0_37 = arith.constant 0 : index
      %c0_38 = arith.constant 0 : index
      %c0_39 = arith.constant 0 : index
      %45 = vector.load %arg16[%c0_37, %c0_38, %c0_39] : memref<2x1x1xf32, #tpu.memory_space<vmem>>, vector<2x1x1xf32>
      %46 = tpu.reciprocal %45 {approx = true} : vector<2x1x1xf32> -> vector<2x1x1xf32>
      %47 = arith.mulf %45, %46 : vector<2x1x1xf32>
      %cst_40 = arith.constant 2.000000e+00 : f32
      %48 = vector.broadcast %cst_40 : f32 to vector<2x1x1xf32>
      %49 = arith.subf %48, %47 : vector<2x1x1xf32>
      %50 = arith.mulf %46, %49 : vector<2x1x1xf32>
      %c0_41 = arith.constant 0 : index
      %c0_42 = arith.constant 0 : index
      %c0_43 = arith.constant 0 : index
      %51 = vector.load %arg15[%c0_41, %c0_42, %c0_43] : memref<2x1x1xf32, #tpu.memory_space<vmem>>, vector<2x1x1xf32>
      %c0_44 = arith.constant 0 : index
      %c0_45 = arith.constant 0 : index
      %c0_46 = arith.constant 0 : index
      %c0_47 = arith.constant 0 : index
      %52 = vector.load %arg14[%c0_44, %c0_45, %c0_46, %c0_47] : memref<2x2x1x128xf32, #tpu.memory_space<vmem>>, vector<1x2x1x128xf32>
      %53 = vector.shape_cast %52 : vector<1x2x1x128xf32> to vector<2x1x128xf32>
      %54 = vector.broadcast %51 : vector<2x1x1xf32> to vector<2x1x128xf32>
      %55 = arith.subf %53, %54 : vector<2x1x128xf32>
      %56 = math.exp %55 : vector<2x1x128xf32>
      %57 = vector.broadcast %50 : vector<2x1x1xf32> to vector<2x1x128xf32>
      %58 = arith.mulf %56, %57 : vector<2x1x128xf32>
      %c0_48 = arith.constant 0 : index
      %c0_49 = arith.constant 0 : index
      %c0_50 = arith.constant 0 : index
      %59 = vector.load %arg13[%c0_48, %c0_49, %c0_50] : memref<2x1x256xf32, #tpu.memory_space<vmem>>, vector<2x1x128xf32>
      tpu.vector_store %arg13[%c0_48, %c0_49, %c0_50], %58 {strides = array<i32>} : memref<2x1x256xf32, #tpu.memory_space<vmem>>, vector<2x1x128xf32>,
      %c1 = arith.constant 1 : index
      %c0_51 = arith.constant 0 : index
      %c0_52 = arith.constant 0 : index
      %c0_53 = arith.constant 0 : index
      %60 = vector.load %arg14[%c1, %c0_51, %c0_52, %c0_53] : memref<2x2x1x128xf32, #tpu.memory_space<vmem>>, vector<1x2x1x128xf32>
      %61 = vector.shape_cast %60 : vector<1x2x1x128xf32> to vector<2x1x128xf32>
      %62 = vector.broadcast %51 : vector<2x1x1xf32> to vector<2x1x128xf32>
      %63 = arith.subf %61, %62 : vector<2x1x128xf32>
      %64 = math.exp %63 : vector<2x1x128xf32>
      %65 = vector.broadcast %50 : vector<2x1x1xf32> to vector<2x1x128xf32>
      %66 = arith.mulf %64, %65 : vector<2x1x128xf32>
      %c0_54 = arith.constant 0 : index
      %c0_55 = arith.constant 0 : index
      %c128 = arith.constant 128 : index
      %67 = vector.load %arg13[%c0_54, %c0_55, %c128] : memref<2x1x256xf32, #tpu.memory_space<vmem>>, vector<2x1x128xf32>
      tpu.vector_store %arg13[%c0_54, %c0_55, %c128], %66 {strides = array<i32>} : memref<2x1x256xf32, #tpu.memory_space<vmem>>, vector<2x1x128xf32>,
      %c0_56 = arith.constant 0 : index
      %c0_57 = arith.constant 0 : index
      %c0_58 = arith.constant 0 : index
      %68 = vector.load %arg17[%c0_56, %c0_57, %c0_58] : memref<2x1x32xf32, #tpu.memory_space<vmem>>, vector<2x1x32xf32>
      %69 = vector.broadcast %50 : vector<2x1x1xf32> to vector<2x1x32xf32>
      %70 = arith.mulf %68, %69 : vector<2x1x32xf32>
      %71 = vector.extract_strided_slice %70 {offsets = [0, 0, 0], sizes = [1, 1, 32], strides = [1, 1, 1]} : vector<2x1x32xf32> to vector<1x1x32xf32>
      %72 = vector.shape_cast %71 : vector<1x1x32xf32> to vector<1x32xf32>
      %73 = vector.extract_strided_slice %70 {offsets = [1, 0, 0], sizes = [1, 1, 32], strides = [1, 1, 1]} : vector<2x1x32xf32> to vector<1x1x32xf32>
      %74 = vector.shape_cast %73 : vector<1x1x32xf32> to vector<1x32xf32>
      %75 = tpu.concatenate %72, %74 in 0 : vector<1x32xf32>, vector<1x32xf32> -> vector<2x32xf32>
      %c0_59 = arith.constant 0 : index
      %c0_60 = arith.constant 0 : index
      %76 = vector.load %arg5[%c0_59, %c0_60] : memref<2x8xf32, #tpu.memory_space<vmem>>, vector<2x8xf32>
      %77 = tpu.concatenate %75, %76 in 1 : vector<2x32xf32>, vector<2x8xf32> -> vector<2x40xf32>
      %c0_61 = arith.constant 0 : index
      %c0_62 = arith.constant 0 : index
      %78 = vector.load %arg4[%c0_61, %c0_62] : memref<2x32xf32, #tpu.memory_space<vmem>>, vector<2x32xf32>
      %c0_63 = arith.constant 0 : index
      %c0_64 = arith.constant 0 : index
      %79 = vector.load %arg8[%c0_63, %c0_64] : memref<40x96xf32, #tpu.memory_space<vmem>>, vector<40x96xf32>
      %cst_65 = arith.constant dense<0.000000e+00> : vector<2x96xf32>
      %80 = tpu.matmul %77, %79, %cst_65 {dimension_numbers = #tpu.dot_dimension_numbers<[1], [0], [0], [1], [0, 0, 1, 1], [], []>} : vector<2x40xf32>, vector<40x96xf32>, vector<2x96xf32> -> vector<2x96xf32>
      %c0_66 = arith.constant 0 : index
      %c0_67 = arith.constant 0 : index
      %81 = vector.load %arg10[%c0_66, %c0_67] : memref<1x96xf32, #tpu.memory_space<vmem>>, vector<1x96xf32>
      %82 = vector.broadcast %81 : vector<1x96xf32> to vector<2x96xf32>
      %83 = arith.addf %80, %82 : vector<2x96xf32>
      %c0_68 = arith.constant 0 : index
      %c0_69 = arith.constant 0 : index
      %84 = vector.load %arg4[%c0_68, %c0_69] : memref<2x32xf32, #tpu.memory_space<vmem>>, vector<2x32xf32>
      %c0_70 = arith.constant 0 : index
      %c0_71 = arith.constant 0 : index
      %85 = vector.load %arg9[%c0_70, %c0_71] : memref<32x96xf32, #tpu.memory_space<vmem>>, vector<32x96xf32>
      %cst_72 = arith.constant dense<0.000000e+00> : vector<2x96xf32>
      %86 = tpu.matmul %84, %85, %cst_72 {dimension_numbers = #tpu.dot_dimension_numbers<[1], [0], [0], [1], [0, 0, 1, 1], [], []>} : vector<2x32xf32>, vector<32x96xf32>, vector<2x96xf32> -> vector<2x96xf32>
      %c0_73 = arith.constant 0 : index
      %c0_74 = arith.constant 0 : index
      %87 = vector.load %arg11[%c0_73, %c0_74] : memref<1x96xf32, #tpu.memory_space<vmem>>, vector<1x96xf32>
      %88 = vector.broadcast %87 : vector<1x96xf32> to vector<2x96xf32>
      %89 = arith.addf %86, %88 : vector<2x96xf32>
      %90 = vector.extract_strided_slice %83 {offsets = [0, 0], sizes = [2, 32], strides = [1, 1]} : vector<2x96xf32> to vector<2x32xf32>
      %91 = vector.extract_strided_slice %89 {offsets = [0, 0], sizes = [2, 32], strides = [1, 1]} : vector<2x96xf32> to vector<2x32xf32>
      %92 = arith.addf %90, %91 : vector<2x32xf32>
      %93 = arith.negf %92 : vector<2x32xf32>
      %94 = math.exp %93 : vector<2x32xf32>
      %cst_75 = arith.constant 1.000000e+00 : f32
      %95 = vector.broadcast %cst_75 : f32 to vector<2x32xf32>
      %96 = arith.addf %95, %94 : vector<2x32xf32>
      %97 = arith.divf %95, %96 : vector<2x32xf32>
      %98 = vector.extract_strided_slice %83 {offsets = [0, 32], sizes = [2, 32], strides = [1, 1]} : vector<2x96xf32> to vector<2x32xf32>
      %99 = vector.extract_strided_slice %89 {offsets = [0, 32], sizes = [2, 32], strides = [1, 1]} : vector<2x96xf32> to vector<2x32xf32>
      %100 = arith.addf %98, %99 : vector<2x32xf32>
      %101 = arith.negf %100 : vector<2x32xf32>
      %102 = math.exp %101 : vector<2x32xf32>
      %cst_76 = arith.constant 1.000000e+00 : f32
      %103 = vector.broadcast %cst_76 : f32 to vector<2x32xf32>
      %104 = arith.addf %103, %102 : vector<2x32xf32>
      %105 = arith.divf %103, %104 : vector<2x32xf32>
      %106 = vector.extract_strided_slice %83 {offsets = [0, 64], sizes = [2, 32], strides = [1, 1]} : vector<2x96xf32> to vector<2x32xf32>
      %107 = vector.extract_strided_slice %89 {offsets = [0, 64], sizes = [2, 32], strides = [1, 1]} : vector<2x96xf32> to vector<2x32xf32>
      %108 = arith.mulf %97, %107 : vector<2x32xf32>
      %109 = arith.addf %106, %108 : vector<2x32xf32>
      %110 = math.tanh %109 : vector<2x32xf32>
      %cst_77 = arith.constant 1.000000e+00 : f32
      %111 = vector.broadcast %cst_77 : f32 to vector<2x32xf32>
      %112 = arith.subf %111, %105 : vector<2x32xf32>
      %113 = arith.mulf %112, %110 : vector<2x32xf32>
      %114 = arith.mulf %105, %78 : vector<2x32xf32>
      %115 = arith.addf %113, %114 : vector<2x32xf32>
      %c0_78 = arith.constant 0 : index
      %c0_79 = arith.constant 0 : index
      %116 = vector.load %arg12[%c0_78, %c0_79] : memref<2x32xf32, #tpu.memory_space<vmem>>, vector<2x32xf32>
      tpu.vector_store %arg12[%c0_78, %c0_79], %115 {strides = array<i32>} : memref<2x32xf32, #tpu.memory_space<vmem>>, vector<2x32xf32>,
    } else {
    }
    return
  }
  func.func @transform_0(%arg0: i32, %arg1: i32) -> (i32, i32, i32) {
    %c0_i32 = arith.constant 0 : i32
    %c0_i32_0 = arith.constant 0 : i32
    return %arg0, %arg1, %c0_i32 : i32, i32, i32
  }
  func.func @transform_1(%arg0: i32, %arg1: i32) -> (i32, i32, i32) {
    %c0_i32 = arith.constant 0 : i32
    %c0_i32_0 = arith.constant 0 : i32
    %c0_i32_1 = arith.constant 0 : i32
    return %arg0, %c0_i32, %c0_i32_0 : i32, i32, i32
  }
  func.func @transform_2(%arg0: i32, %arg1: i32) -> (i32, i32) {
    %c0_i32 = arith.constant 0 : i32
    %c0_i32_0 = arith.constant 0 : i32
    return %arg0, %c0_i32 : i32, i32
  }
  func.func @transform_3(%arg0: i32, %arg1: i32) -> (i32, i32) {
    %c0_i32 = arith.constant 0 : i32
    %c0_i32_0 = arith.constant 0 : i32
    return %arg0, %c0_i32 : i32, i32
  }
  func.func @transform_4(%arg0: i32, %arg1: i32) -> (i32, i32) {
    %c0_i32 = arith.constant 0 : i32
    %c0_i32_0 = arith.constant 0 : i32
    %c0_i32_1 = arith.constant 0 : i32
    return %c0_i32, %c0_i32_0 : i32, i32
  }
  func.func @transform_5(%arg0: i32, %arg1: i32) -> (i32, i32, i32) {
    %c0_i32 = arith.constant 0 : i32
    %c0_i32_0 = arith.constant 0 : i32
    %c0_i32_1 = arith.constant 0 : i32
    %c0_i32_2 = arith.constant 0 : i32
    return %c0_i32, %c0_i32_0, %c0_i32_1 : i32, i32, i32
  }
  func.func @transform_6(%arg0: i32, %arg1: i32) -> (i32, i32) {
    %c0_i32 = arith.constant 0 : i32
    %c0_i32_0 = arith.constant 0 : i32
    %c0_i32_1 = arith.constant 0 : i32
    return %c0_i32, %c0_i32_0 : i32, i32
  }
  func.func @transform_7(%arg0: i32, %arg1: i32) -> (i32, i32) {
    %c0_i32 = arith.constant 0 : i32
    %c0_i32_0 = arith.constant 0 : i32
    %c0_i32_1 = arith.constant 0 : i32
    return %c0_i32, %c0_i32_0 : i32, i32
  }
  func.func @transform_8(%arg0: i32, %arg1: i32) -> (i32, i32) {
    %c0_i32 = arith.constant 0 : i32
    %c0_i32_0 = arith.constant 0 : i32
    %c0_i32_1 = arith.constant 0 : i32
    return %c0_i32, %c0_i32_0 : i32, i32
  }
  func.func @transform_9(%arg0: i32, %arg1: i32) -> (i32, i32) {
    %c0_i32 = arith.constant 0 : i32
    %c0_i32_0 = arith.constant 0 : i32
    %c0_i32_1 = arith.constant 0 : i32
    return %c0_i32, %c0_i32_0 : i32, i32
  }
  func.func @transform_10(%arg0: i32, %arg1: i32) -> (i32, i32) {
    %c0_i32 = arith.constant 0 : i32
    %c0_i32_0 = arith.constant 0 : i32
    return %arg0, %c0_i32 : i32, i32
  }
  func.func @transform_11(%arg0: i32, %arg1: i32) -> (i32, i32, i32) {
    %c0_i32 = arith.constant 0 : i32
    %c0_i32_0 = arith.constant 0 : i32
    %c0_i32_1 = arith.constant 0 : i32
    return %arg0, %c0_i32, %c0_i32_0 : i32, i32, i32
  }
}

</mosaic_0001>

<llo_original>
// kernel: tpu_custom_call.1
$region0: #{tpu_custom_call.1}
  #allocation0 [shape = 'u32[]', space=smem, size = 0x4, offset = 0x4, fixed_abs, tag = 'smem constant byte address 0x4 - core index']
  #allocation1 [shape = 'u32[144,128]{1,0:T(1,128)}', space=vmem, size = 0x12000, scoped, tag = 'internal scratch']
  #allocation2 [shape = 'f32[2,2,1,128]{3,2,1,0:T(1,128)}', space=vmem, size = 0x800, scoped, tag = 'scratch operand']
  #allocation3 [shape = 'f32[2,1,1]{2,1,0:T(1,128)}', space=vmem, size = 0x400, scoped, tag = 'scratch operand']
  #allocation4 [shape = 'f32[2,1,1]{2,1,0:T(1,128)}', space=vmem, size = 0x400, scoped, tag = 'scratch operand']
  #allocation5 [shape = 'f32[2,1,32]{2,1,0:T(1,128)}', space=vmem, size = 0x400, scoped, tag = 'scratch operand']
  %s0 = inlined_call_operand.vmem [shape: f32[2,256,32], index: 0, kind: input, shape index: {}]
  %s1 = inlined_call_operand.vmem [shape: f32[2,1,32], index: 1, kind: input, shape index: {}]
  %s2 = inlined_call_operand.vmem [shape: f32[2,32], index: 2, kind: input, shape index: {}]
  %s3 = inlined_call_operand.vmem [shape: f32[2,8], index: 3, kind: input, shape index: {}]
  %s4 = inlined_call_operand.vmem [shape: f32[32,32], index: 4, kind: input, shape index: {}]
  %s5 = inlined_call_operand.vmem [shape: f32[1,1,32], index: 5, kind: input, shape index: {}]
  %s6 = inlined_call_operand.vmem [shape: f32[40,96], index: 6, kind: input, shape index: {}]
  %s7 = inlined_call_operand.vmem [shape: f32[32,96], index: 7, kind: input, shape index: {}]
  %s8 = inlined_call_operand.vmem [shape: f32[1,96], index: 8, kind: input, shape index: {}]
  %s9 = inlined_call_operand.vmem [shape: f32[1,96], index: 9, kind: input, shape index: {}]
  %s10 = inlined_call_operand.hbm [shape: f32[2,32], index: 10, kind: output, shape index: {0}]
  %s11 = inlined_call_operand.hbm [shape: f32[2,1,256], index: 11, kind: output, shape index: {1}]
  %12 = xla_tuple %s10, %s11
  %s13 = sld [smem:[#allocation0]]
  $region127: #{tpu_custom_call.1} parent=0
    _
  %s15 = ssub.s32 1, %s13
  %s16 = scalar_select 0, %s15, %s13
  $region1: #{tpu_custom_call.1} parent=0
    #allocation6 [shape = 'u8[262144]{0}', space=vmem, size = 0x40000, scoped, tag = 'input window, operand 0']
    #allocation7 [shape = 'u8[1024]{0}', space=vmem, size = 0x400, scoped, tag = 'output window, operand 0, single buffered']
    #allocation8 [shape = 's32[2]{0}', space=sflag, size = 0x8, scoped, tag = 'scoped memory for tpu_custom_call.1']
    #allocation9 [shape = 'u8[2048]{0}', space=vmem, size = 0x800, scoped, tag = 'output window, operand 1, single buffered']
    #allocation10 [shape = 's32[1]{0}', space=sflag, size = 0x4, scoped, tag = 'scoped memory for tpu_custom_call.1']
    %17 = vsyncpa [#allocation8], 0
    %18 = vsyncpa [#allocation10], 0
    loop: start=0, step=1, limit=4
    $region2: #{tpu_custom_call.1} parent=1 // loop_pre_header
      _
    $region3: #{tpu_custom_call.1} parent=1 // loop_header
      %s20 = sphi 0, %s24
      %p21 = scmp.ge.s32.totalorder %s20, 4
      %s27 = sphi 0, %s39
      %s28 = sphi 0, %s35
      %s29 = sphi 0, %s27
      %s30 = sphi 0, %s28
      %s31 = sphi 0, %s29
      %s32 = sphi 0, %s30
      %s44 = sphi 0, %s46
      %s47 = sphi 0, %s44
      %s48 = sphi 0, %s47
      %s64 = sphi 0, %s48
      %s70 = sphi 0, %s72
      %s73 = sphi 0, %s70
      %s74 = sphi 0, %s73
      %s90 = sphi 0, %s74
      %s96 = sphi 0, %s98
      %s99 = sphi 0, %s96
      %s100 = sphi 0, %s99
      %s116 = sphi 0, %s100
      %s122 = sphi 0, %s124
      %s125 = sphi 0, %s122
      %s126 = sphi 0, %s125
      %s142 = sphi 0, %s126
      %s146 = sphi 0, %s146
      %s148 = sphi 0, %s146
      %s149 = sphi 0, %s148
      %s163 = sphi 0, %s149
      %s167 = sphi 0, %s167
      %s169 = sphi 0, %s167
      %s170 = sphi 0, %s169
      %s184 = sphi 0, %s170
      %s188 = sphi 0, %s188
      %s190 = sphi 0, %s188
      %s191 = sphi 0, %s190
      %s205 = sphi 0, %s191
      %s209 = sphi 0, %s209
      %s211 = sphi 0, %s209
      %s212 = sphi 0, %s211
      %s226 = sphi 0, %s212
      %s230 = sphi 0, %s230
      %s232 = sphi 0, %s230
      %s233 = sphi 0, %s232
      %s247 = sphi 0, %s233
      %s251 = sphi 0, %s251
      %s253 = sphi 0, %s251
      %s254 = sphi 0, %s253
      %s268 = sphi 0, %s254
      %s274 = sphi 0, %s276
      %s277 = sphi 0, %s274
      %s278 = sphi 0, %s277
      %s294 = sphi 0, %s278
      %s300 = sphi 0, %s302
      %s303 = sphi 0, %s300
      %s304 = sphi 0, %s303
      %s320 = sphi 0, %s304
    $region4: #{tpu_custom_call.1} parent=1 // loop_header_branch
      %23 = sbr.rel (%p21) target = $region8
    $region5: #{tpu_custom_call.1} parent=1 // loop_body
      %s25 = ssub.s32 %s20, 1
      %s26 = ssub.s32 %s20, 2
      %s33 = sadd.s32 1, %s28
      %p34 = scmp.ge.s32.totalorder %s33, 2
      %s35 = scalar_select %p34, 0, %s33
      %s36 = sadd.s32 1, %s27
      %s37 = scalar_select %p34, %s36, %s27
      %p38 = scmp.ge.s32.totalorder %s37, 1
      %s39 = scalar_select %p38, 0, %s37
      %s40 = ssub.s32 %s27, %s39
      %s41 = ssub.s32 %s28, %s35
      %s42 = sor.u32 %s40, %s41
      %p43 = scmp.eq.s32.totalorder %s42, 0
      %s45 = sadd.s32 %s44, 1
      %s46 = scalar_select %p43, %s44, %s45
      %p49 = pneg %p43
      %p50 = scmp.eq.s32.totalorder %s20, 1
      %p51 = por %p49, %p50
      %p52 = scmp.ne.s32.totalorder %s44, %s47
      %p53 = scmp.eq.s32.totalorder %s20, 0
      %p54 = por %p52, %p53
      %p55 = scmp.ne.s32.totalorder %s44, %s47
      %p56 = scmp.eq.s32.totalorder %s25, 1
      %p57 = por %p55, %p56
      %p58 = scmp.ne.s32.totalorder %s47, %s48
      %p59 = scmp.eq.s32.totalorder %s25, 0
      %p60 = por %p58, %p59
      %p61 = scmp.ne.s32.totalorder %s47, %s48
      %p62 = scmp.eq.s32.totalorder %s26, 1
      %p63 = por %p61, %p62
      %p65 = scmp.ne.s32.totalorder %s48, %s64
      %p66 = scmp.eq.s32.totalorder %s26, 0
      %p67 = por %p65, %p66
      %s68 = ssub.s32 %s27, %s39
      %p69 = scmp.eq.s32.totalorder %s68, 0
      %s71 = sadd.s32 %s70, 1
      %s72 = scalar_select %p69, %s70, %s71
      %p75 = pneg %p69
      %p76 = scmp.eq.s32.totalorder %s20, 1
      %p77 = por %p75, %p76
      %p78 = scmp.ne.s32.totalorder %s70, %s73
      %p79 = scmp.eq.s32.totalorder %s20, 0
      %p80 = por %p78, %p79
      %p81 = scmp.ne.s32.totalorder %s70, %s73
      %p82 = scmp.eq.s32.totalorder %s25, 1
      %p83 = por %p81, %p82
      %p84 = scmp.ne.s32.totalorder %s73, %s74
      %p85 = scmp.eq.s32.totalorder %s25, 0
      %p86 = por %p84, %p85
      %p87 = scmp.ne.s32.totalorder %s73, %s74
      %p88 = scmp.eq.s32.totalorder %s26, 1
      %p89 = por %p87, %p88
      %p91 = scmp.ne.s32.totalorder %s74, %s90
      %p92 = scmp.eq.s32.totalorder %s26, 0
      %p93 = por %p91, %p92
      %s94 = ssub.s32 %s27, %s39
      %p95 = scmp.eq.s32.totalorder %s94, 0
      %s97 = sadd.s32 %s96, 1
      %s98 = scalar_select %p95, %s96, %s97
      %p101 = pneg %p95
      %p102 = scmp.eq.s32.totalorder %s20, 1
      %p103 = por %p101, %p102
      %p104 = scmp.ne.s32.totalorder %s96, %s99
      %p105 = scmp.eq.s32.totalorder %s20, 0
      %p106 = por %p104, %p105
      %p107 = scmp.ne.s32.totalorder %s96, %s99
      %p108 = scmp.eq.s32.totalorder %s25, 1
      %p109 = por %p107, %p108
      %p110 = scmp.ne.s32.totalorder %s99, %s100
      %p111 = scmp.eq.s32.totalorder %s25, 0
      %p112 = por %p110, %p111
      %p113 = scmp.ne.s32.totalorder %s99, %s100
      %p114 = scmp.eq.s32.totalorder %s26, 1
      %p115 = por %p113, %p114
      %p117 = scmp.ne.s32.totalorder %s100, %s116
      %p118 = scmp.eq.s32.totalorder %s26, 0
      %p119 = por %p117, %p118
      %s120 = ssub.s32 %s27, %s39
      %p121 = scmp.eq.s32.totalorder %s120, 0
      %s123 = sadd.s32 %s122, 1
      %s124 = scalar_select %p121, %s122, %s123
      %p127 = pneg %p121
      %p128 = scmp.eq.s32.totalorder %s20, 1
      %p129 = por %p127, %p128
      %p130 = scmp.ne.s32.totalorder %s122, %s125
      %p131 = scmp.eq.s32.totalorder %s20, 0
      %p132 = por %p130, %p131
      %p133 = scmp.ne.s32.totalorder %s122, %s125
      %p134 = scmp.eq.s32.totalorder %s25, 1
      %p135 = por %p133, %p134
      %p136 = scmp.ne.s32.totalorder %s125, %s126
      %p137 = scmp.eq.s32.totalorder %s25, 0
      %p138 = por %p136, %p137
      %p139 = scmp.ne.s32.totalorder %s125, %s126
      %p140 = scmp.eq.s32.totalorder %s26, 1
      %p141 = por %p139, %p140
      %p143 = scmp.ne.s32.totalorder %s126, %s142
      %p144 = scmp.eq.s32.totalorder %s26, 0
      %p145 = por %p143, %p144
      %s147 = sadd.s32 %s146, 1
      %p150 = scmp.eq.s32.totalorder %s20, 1
      %p151 = scmp.ne.s32.totalorder %s146, %s148
      %p152 = scmp.eq.s32.totalorder %s20, 0
      %p153 = por %p151, %p152
      %p154 = scmp.ne.s32.totalorder %s146, %s148
      %p155 = scmp.eq.s32.totalorder %s25, 1
      %p156 = por %p154, %p155
      %p157 = scmp.ne.s32.totalorder %s148, %s149
      %p158 = scmp.eq.s32.totalorder %s25, 0
      %p159 = por %p157, %p158
      %p160 = scmp.ne.s32.totalorder %s148, %s149
      %p161 = scmp.eq.s32.totalorder %s26, 1
      %p162 = por %p160, %p161
      %p164 = scmp.ne.s32.totalorder %s149, %s163
      %p165 = scmp.eq.s32.totalorder %s26, 0
      %p166 = por %p164, %p165
      %s168 = sadd.s32 %s167, 1
      %p171 = scmp.eq.s32.totalorder %s20, 1
      %p172 = scmp.ne.s32.totalorder %s167, %s169
      %p173 = scmp.eq.s32.totalorder %s20, 0
      %p174 = por %p172, %p173
      %p175 = scmp.ne.s32.totalorder %s167, %s169
      %p176 = scmp.eq.s32.totalorder %s25, 1
      %p177 = por %p175, %p176
      %p178 = scmp.ne.s32.totalorder %s169, %s170
      %p179 = scmp.eq.s32.totalorder %s25, 0
      %p180 = por %p178, %p179
      %p181 = scmp.ne.s32.totalorder %s169, %s170
      %p182 = scmp.eq.s32.totalorder %s26, 1
      %p183 = por %p181, %p182
      %p185 = scmp.ne.s32.totalorder %s170, %s184
      %p186 = scmp.eq.s32.totalorder %s26, 0
      %p187 = por %p185, %p186
      %s189 = sadd.s32 %s188, 1
      %p192 = scmp.eq.s32.totalorder %s20, 1
      %p193 = scmp.ne.s32.totalorder %s188, %s190
      %p194 = scmp.eq.s32.totalorder %s20, 0
      %p195 = por %p193, %p194
      %p196 = scmp.ne.s32.totalorder %s188, %s190
      %p197 = scmp.eq.s32.totalorder %s25, 1
      %p198 = por %p196, %p197
      %p199 = scmp.ne.s32.totalorder %s190, %s191
      %p200 = scmp.eq.s32.totalorder %s25, 0
      %p201 = por %p199, %p200
      %p202 = scmp.ne.s32.totalorder %s190, %s191
      %p203 = scmp.eq.s32.totalorder %s26, 1
      %p204 = por %p202, %p203
      %p206 = scmp.ne.s32.totalorder %s191, %s205
      %p207 = scmp.eq.s32.totalorder %s26, 0
      %p208 = por %p206, %p207
      %s210 = sadd.s32 %s209, 1
      %p213 = scmp.eq.s32.totalorder %s20, 1
      %p214 = scmp.ne.s32.totalorder %s209, %s211
      %p215 = scmp.eq.s32.totalorder %s20, 0
      %p216 = por %p214, %p215
      %p217 = scmp.ne.s32.totalorder %s209, %s211
      %p218 = scmp.eq.s32.totalorder %s25, 1
      %p219 = por %p217, %p218
      %p220 = scmp.ne.s32.totalorder %s211, %s212
      %p221 = scmp.eq.s32.totalorder %s25, 0
      %p222 = por %p220, %p221
      %p223 = scmp.ne.s32.totalorder %s211, %s212
      %p224 = scmp.eq.s32.totalorder %s26, 1
      %p225 = por %p223, %p224
      %p227 = scmp.ne.s32.totalorder %s212, %s226
      %p228 = scmp.eq.s32.totalorder %s26, 0
      %p229 = por %p227, %p228
      %s231 = sadd.s32 %s230, 1
      %p234 = scmp.eq.s32.totalorder %s20, 1
      %p235 = scmp.ne.s32.totalorder %s230, %s232
      %p236 = scmp.eq.s32.totalorder %s20, 0
      %p237 = por %p235, %p236
      %p238 = scmp.ne.s32.totalorder %s230, %s232
      %p239 = scmp.eq.s32.totalorder %s25, 1
      %p240 = por %p238, %p239
      %p241 = scmp.ne.s32.totalorder %s232, %s233
      %p242 = scmp.eq.s32.totalorder %s25, 0
      %p243 = por %p241, %p242
      %p244 = scmp.ne.s32.totalorder %s232, %s233
      %p245 = scmp.eq.s32.totalorder %s26, 1
      %p246 = por %p244, %p245
      %p248 = scmp.ne.s32.totalorder %s233, %s247
      %p249 = scmp.eq.s32.totalorder %s26, 0
      %p250 = por %p248, %p249
      %s252 = sadd.s32 %s251, 1
      %p255 = scmp.eq.s32.totalorder %s20, 1
      %p256 = scmp.ne.s32.totalorder %s251, %s253
      %p257 = scmp.eq.s32.totalorder %s20, 0
      %p258 = por %p256, %p257
      %p259 = scmp.ne.s32.totalorder %s251, %s253
      %p260 = scmp.eq.s32.totalorder %s25, 1
      %p261 = por %p259, %p260
      %p262 = scmp.ne.s32.totalorder %s253, %s254
      %p263 = scmp.eq.s32.totalorder %s25, 0
      %p264 = por %p262, %p263
      %p265 = scmp.ne.s32.totalorder %s253, %s254
      %p266 = scmp.eq.s32.totalorder %s26, 1
      %p267 = por %p265, %p266
      %p269 = scmp.ne.s32.totalorder %s254, %s268
      %p270 = scmp.eq.s32.totalorder %s26, 0
      %p271 = por %p269, %p270
      %s272 = ssub.s32 %s27, %s39
      %p273 = scmp.eq.s32.totalorder %s272, 0
      %s275 = sadd.s32 %s274, 1
      %s276 = scalar_select %p273, %s274, %s275
      %p279 = pneg %p273
      %p280 = scmp.eq.s32.totalorder %s20, 1
      %p281 = por %p279, %p280
      %p282 = scmp.ne.s32.totalorder %s274, %s277
      %p283 = scmp.eq.s32.totalorder %s20, 0
      %p284 = por %p282, %p283
      %p285 = scmp.ne.s32.totalorder %s274, %s277
      %p286 = scmp.eq.s32.totalorder %s25, 1
      %p287 = por %p285, %p286
      %p288 = scmp.ne.s32.totalorder %s277, %s278
      %p289 = scmp.eq.s32.totalorder %s25, 0
      %p290 = por %p288, %p289
      %p291 = scmp.ne.s32.totalorder %s277, %s278
      %p292 = scmp.eq.s32.totalorder %s26, 1
      %p293 = por %p291, %p292
      %p295 = scmp.ne.s32.totalorder %s278, %s294
      %p296 = scmp.eq.s32.totalorder %s26, 0
      %p297 = por %p295, %p296
      %s298 = ssub.s32 %s27, %s39
      %p299 = scmp.eq.s32.totalorder %s298, 0
      %s301 = sadd.s32 %s300, 1
      %s302 = scalar_select %p299, %s300, %s301
      %p305 = pneg %p299
      %p306 = scmp.eq.s32.totalorder %s20, 1
      %p307 = por %p305, %p306
      %p308 = scmp.ne.s32.totalorder %s300, %s303
      %p309 = scmp.eq.s32.totalorder %s20, 0
      %p310 = por %p308, %p309
      %p311 = scmp.ne.s32.totalorder %s300, %s303
      %p312 = scmp.eq.s32.totalorder %s25, 1
      %p313 = por %p311, %p312
      %p314 = scmp.ne.s32.totalorder %s303, %s304
      %p315 = scmp.eq.s32.totalorder %s25, 0
      %p316 = por %p314, %p315
      %p317 = scmp.ne.s32.totalorder %s303, %s304
      %p318 = scmp.eq.s32.totalorder %s26, 1
      %p319 = por %p317, %p318
      %p321 = scmp.ne.s32.totalorder %s304, %s320
      %p322 = scmp.eq.s32.totalorder %s26, 0
      %p323 = por %p321, %p322
      %p324 = scmp.le.s32.totalorder 1, %s20
      %p325 = scmp.lt.s32.totalorder %s20, 3
      %p326 = pnand %p324, %p325
      %p327 = pneg %p326
      // Predicated region
      $region9: #{tpu_custom_call.1} parent=5 // pred_check
        _
      $region10: #{tpu_custom_call.1} parent=5 // pred_check_branch
        %329 = sbr.rel (%p326) target = $region12
      $region11: #{tpu_custom_call.1} parent=5 // pred_region
        %s330 = ssub.s32 %s20, 1
        // Predicated region
        $region13: #{tpu_custom_call.1} parent=11 // pred_check
          %p331 = pneg %p86
        $region14: #{tpu_custom_call.1} parent=11 // pred_check_branch
          %333 = sbr.rel (%p331) target = $region16
        $region15: #{tpu_custom_call.1} parent=11 // pred_region
          %s334 = smul.u32 2, %s29
          %p335 = scmp.lt.s32.totalorder %s334, 1
          %s336 = scalar_select %p335, %s334, 1
          %s337 = scalar_lea.vmem %s1, %s336
          %s338 = smul.u32 2, %s29
        $region16: #{tpu_custom_call.1} parent=11 // pred_fallthru
          _
        // Predicated region
        $region17: #{tpu_custom_call.1} parent=11 // pred_check
          %p339 = pneg %p112
        $region18: #{tpu_custom_call.1} parent=11 // pred_check_branch
          %341 = sbr.rel (%p339) target = $region20
        $region19: #{tpu_custom_call.1} parent=11 // pred_region
          %p342 = scmp.lt.s32.totalorder %s29, 0
          %s343 = scalar_select %p342, %s29, 0
          %s344 = smul.addr %s343, 2
          %s345 = scalar_lea.vmem %s2, %s344
        $region20: #{tpu_custom_call.1} parent=11 // pred_fallthru
          _
        // Predicated region
        $region21: #{tpu_custom_call.1} parent=11 // pred_check
          %p346 = pneg %p138
        $region22: #{tpu_custom_call.1} parent=11 // pred_check_branch
          %348 = sbr.rel (%p346) target = $region24
        $region23: #{tpu_custom_call.1} parent=11 // pred_region
          %p349 = scmp.lt.s32.totalorder %s29, 0
          %s350 = scalar_select %p349, %s29, 0
          %s351 = smul.addr %s350, 2
          %s352 = scalar_lea.vmem %s3, %s351
        $region24: #{tpu_custom_call.1} parent=11 // pred_fallthru
          _
        // Predicated region
        $region25: #{tpu_custom_call.1} parent=11 // pred_check
          %p353 = pneg %p159
        $region26: #{tpu_custom_call.1} parent=11 // pred_check_branch
          %355 = sbr.rel (%p353) target = $region28
        $region27: #{tpu_custom_call.1} parent=11 // pred_region
          _
        $region28: #{tpu_custom_call.1} parent=11 // pred_fallthru
          _
        // Predicated region
        $region29: #{tpu_custom_call.1} parent=11 // pred_check
          %p356 = pneg %p180
        $region30: #{tpu_custom_call.1} parent=11 // pred_check_branch
          %358 = sbr.rel (%p356) target = $region32
        $region31: #{tpu_custom_call.1} parent=11 // pred_region
          _
        $region32: #{tpu_custom_call.1} parent=11 // pred_fallthru
          _
        // Predicated region
        $region33: #{tpu_custom_call.1} parent=11 // pred_check
          %p359 = pneg %p201
        $region34: #{tpu_custom_call.1} parent=11 // pred_check_branch
          %361 = sbr.rel (%p359) target = $region36
        $region35: #{tpu_custom_call.1} parent=11 // pred_region
          _
        $region36: #{tpu_custom_call.1} parent=11 // pred_fallthru
          _
        // Predicated region
        $region37: #{tpu_custom_call.1} parent=11 // pred_check
          %p362 = pneg %p222
        $region38: #{tpu_custom_call.1} parent=11 // pred_check_branch
          %364 = sbr.rel (%p362) target = $region40
        $region39: #{tpu_custom_call.1} parent=11 // pred_region
          _
        $region40: #{tpu_custom_call.1} parent=11 // pred_fallthru
          _
        // Predicated region
        $region41: #{tpu_custom_call.1} parent=11 // pred_check
          %p365 = pneg %p243
        $region42: #{tpu_custom_call.1} parent=11 // pred_check_branch
          %367 = sbr.rel (%p365) target = $region44
        $region43: #{tpu_custom_call.1} parent=11 // pred_region
          _
        $region44: #{tpu_custom_call.1} parent=11 // pred_fallthru
          _
        // Predicated region
        $region45: #{tpu_custom_call.1} parent=11 // pred_check
          %p368 = pneg %p264
        $region46: #{tpu_custom_call.1} parent=11 // pred_check_branch
          %370 = sbr.rel (%p368) target = $region48
        $region47: #{tpu_custom_call.1} parent=11 // pred_region
          _
        $region48: #{tpu_custom_call.1} parent=11 // pred_fallthru
          _
      $region12: #{tpu_custom_call.1} parent=5 // pred_fallthru
        _
      %p371 = scmp.lt.s32.totalorder %s20, 2
      // Predicated region
      $region49: #{tpu_custom_call.1} parent=5 // pred_check
        %p372 = pneg %p371
      $region50: #{tpu_custom_call.1} parent=5 // pred_check_branch
        %374 = sbr.rel (%p372) target = $region52
      $region51: #{tpu_custom_call.1} parent=5 // pred_region
        // Predicated region
        $region53: #{tpu_custom_call.1} parent=51 // pred_check
          %p375 = pneg %p54
        $region54: #{tpu_custom_call.1} parent=51 // pred_check_branch
          %377 = sbr.rel (%p375) target = $region56
        $region55: #{tpu_custom_call.1} parent=51 // pred_region
          %s378 = sand.u32 %s44, 1
          %s379 = sand.u32 %s44, 1
          %s380 = smul.addr %s379, 256
          %s381 = scalar_lea.vmem [#allocation6], %s380
          %s382 = smul.u32 2, %s27
          %s383 = smul.u32 16, %s28
          %s384 = smul.addr %s382, 32
          %s385 = sadd.s32 %s383, %s384
          %s386 = smul.addr %s385, 8
          %s387 = scalar_lea.vmem %s0, %s386
          // Predicated region
          $region57: #{tpu_custom_call.1} parent=55 // pred_check
            _
          $region58: #{tpu_custom_call.1} parent=55 // pred_check_branch
            %389 = sbr.rel (0) target = $region60
          $region59: #{tpu_custom_call.1} parent=55 // pred_region
            // Predicated region
            $region61: #{tpu_custom_call.1} parent=59 // pred_check
              _
            $region62: #{tpu_custom_call.1} parent=59 // pred_check_branch
              %391 = sbr.rel (0) target = $region64
            $region63: #{tpu_custom_call.1} parent=59 // pred_region
              // Predicated region
              $region76: #{tpu_custom_call.1} parent=63 // pred_check
                _
              $region77: #{tpu_custom_call.1} parent=63 // pred_check_branch
                %469 = sbr.rel (0) target = $region79
              $region78: #{tpu_custom_call.1} parent=63 // pred_region
                loop: start=0, step=1, limit=1
                $region80: #{tpu_custom_call.1} parent=78 // loop_pre_header
                  _
                $region81: #{tpu_custom_call.1} parent=78 // loop_header
                  %s471 = sphi 0, %s475
                  %p472 = scmp.ge.s32.totalorder %s471, 1
                  %s476 = sphi %s387, %s387
                  %s477 = sphi %s381, %s381
                $region82: #{tpu_custom_call.1} parent=78 // loop_header_branch
                  %474 = sbr.rel (%p472) target = $region86
                $region83: #{tpu_custom_call.1} parent=78 // loop_body
                  %v478 = vld [vmem:[%s476] sm:$0xff]
                  %479 = vst [vmem:[%s477] sm:$0xff] %v478
                  %v480 = vld [vmem:[%s476 + $0x8] sm:$0xff]
                  %481 = vst [vmem:[%s477 + $0x8] sm:$0xff] %v480
                  %v482 = vld [vmem:[%s476 + $0x10] sm:$0xff]
                  %483 = vst [vmem:[%s477 + $0x10] sm:$0xff] %v482
                  %v484 = vld [vmem:[%s476 + $0x18] sm:$0xff]
                  %485 = vst [vmem:[%s477 + $0x18] sm:$0xff] %v484
                  %v486 = vld [vmem:[%s476 + $0x20] sm:$0xff]
                  %487 = vst [vmem:[%s477 + $0x20] sm:$0xff] %v486
                  %v488 = vld [vmem:[%s476 + $0x28] sm:$0xff]
                  %489 = vst [vmem:[%s477 + $0x28] sm:$0xff] %v488
                  %v490 = vld [vmem:[%s476 + $0x30] sm:$0xff]
                  %491 = vst [vmem:[%s477 + $0x30] sm:$0xff] %v490
                  %v492 = vld [vmem:[%s476 + $0x38] sm:$0xff]
                  %493 = vst [vmem:[%s477 + $0x38] sm:$0xff] %v492
                  %v494 = vld [vmem:[%s476 + $0x40] sm:$0xff]
                  %495 = vst [vmem:[%s477 + $0x40] sm:$0xff] %v494
                  %v496 = vld [vmem:[%s476 + $0x48] sm:$0xff]
                  %497 = vst [vmem:[%s477 + $0x48] sm:$0xff] %v496
                  %v498 = vld [vmem:[%s476 + $0x50] sm:$0xff]
                  %499 = vst [vmem:[%s477 + $0x50] sm:$0xff] %v498
                  %v500 = vld [vmem:[%s476 + $0x58] sm:$0xff]
                  %501 = vst [vmem:[%s477 + $0x58] sm:$0xff] %v500
                  %v502 = vld [vmem:[%s476 + $0x60] sm:$0xff]
                  %503 = vst [vmem:[%s477 + $0x60] sm:$0xff] %v502
                  %v504 = vld [vmem:[%s476 + $0x68] sm:$0xff]
                  %505 = vst [vmem:[%s477 + $0x68] sm:$0xff] %v504
                  %v506 = vld [vmem:[%s476 + $0x70] sm:$0xff]
                  %507 = vst [vmem:[%s477 + $0x70] sm:$0xff] %v506
                  %v508 = vld [vmem:[%s476 + $0x78] sm:$0xff]
                  %509 = vst [vmem:[%s477 + $0x78] sm:$0xff] %v508
                  %v510 = vld [vmem:[%s476 + $0x100] sm:$0xff]
                  %511 = vst [vmem:[%s477 + $0x80] sm:$0xff] %v510
                  %v512 = vld [vmem:[%s476 + $0x108] sm:$0xff]
                  %513 = vst [vmem:[%s477 + $0x88] sm:$0xff] %v512
                  %v514 = vld [vmem:[%s476 + $0x110] sm:$0xff]
                  %515 = vst [vmem:[%s477 + $0x90] sm:$0xff] %v514
                  %v516 = vld [vmem:[%s476 + $0x118] sm:$0xff]
                  %517 = vst [vmem:[%s477 + $0x98] sm:$0xff] %v516
                  %v518 = vld [vmem:[%s476 + $0x120] sm:$0xff]
                  %519 = vst [vmem:[%s477 + $0xa0] sm:$0xff] %v518
                  %v520 = vld [vmem:[%s476 + $0x128] sm:$0xff]
                  %521 = vst [vmem:[%s477 + $0xa8] sm:$0xff] %v520
                  %v522 = vld [vmem:[%s476 + $0x130] sm:$0xff]
                  %523 = vst [vmem:[%s477 + $0xb0] sm:$0xff] %v522
                  %v524 = vld [vmem:[%s476 + $0x138] sm:$0xff]
                  %525 = vst [vmem:[%s477 + $0xb8] sm:$0xff] %v524
                  %v526 = vld [vmem:[%s476 + $0x140] sm:$0xff]
                  %527 = vst [vmem:[%s477 + $0xc0] sm:$0xff] %v526
                  %v528 = vld [vmem:[%s476 + $0x148] sm:$0xff]
                  %529 = vst [vmem:[%s477 + $0xc8] sm:$0xff] %v528
                  %v530 = vld [vmem:[%s476 + $0x150] sm:$0xff]
                  %531 = vst [vmem:[%s477 + $0xd0] sm:$0xff] %v530
                  %v532 = vld [vmem:[%s476 + $0x158] sm:$0xff]
                  %533 = vst [vmem:[%s477 + $0xd8] sm:$0xff] %v532
                  %v534 = vld [vmem:[%s476 + $0x160] sm:$0xff]
                  %535 = vst [vmem:[%s477 + $0xe0] sm:$0xff] %v534
                  %v536 = vld [vmem:[%s476 + $0x168] sm:$0xff]
                  %537 = vst [vmem:[%s477 + $0xe8] sm:$0xff] %v536
                  %v538 = vld [vmem:[%s476 + $0x170] sm:$0xff]
                  %539 = vst [vmem:[%s477 + $0xf0] sm:$0xff] %v538
                  %v540 = vld [vmem:[%s476 + $0x178] sm:$0xff]
                  %541 = vst [vmem:[%s477 + $0xf8] sm:$0xff] %v540
                $region84: #{tpu_custom_call.1} parent=78 // loop_footer
                  %s475 = sadd.s32 1, %s471
                $region85: #{tpu_custom_call.1} parent=78 // loop_footer_branch
                  %470 = sbr.rel target = $region81
                $region86: #{tpu_custom_call.1} parent=78 // loop_exit
                  _
              $region79: #{tpu_custom_call.1} parent=63 // pred_fallthru
                _
              // Predicated region
              $region87: #{tpu_custom_call.1} parent=63 // pred_check
                _
              $region88: #{tpu_custom_call.1} parent=63 // pred_check_branch
                %543 = sbr.rel target = $region90
              $region89: #{tpu_custom_call.1} parent=63 // pred_region
                _
              $region90: #{tpu_custom_call.1} parent=63 // pred_fallthru
                _
            $region64: #{tpu_custom_call.1} parent=59 // pred_fallthru
              _
            // Predicated region
            $region65: #{tpu_custom_call.1} parent=59 // pred_check
              _
            $region66: #{tpu_custom_call.1} parent=59 // pred_check_branch
              %393 = sbr.rel target = $region68
            $region67: #{tpu_custom_call.1} parent=59 // pred_region
              %s395 = ssub.s32 256, 1
              loop: start=0, step=1, limit=1
              $region69: #{tpu_custom_call.1} parent=67 // loop_pre_header
                _
              $region70: #{tpu_custom_call.1} parent=67 // loop_header
                %s397 = sphi 0, %s401
                %p398 = scmp.ge.s32.totalorder %s397, 1
                %s402 = sphi %s387, %s387
                %s403 = sphi %s381, %s381
              $region71: #{tpu_custom_call.1} parent=67 // loop_header_branch
                %400 = sbr.rel (%p398) target = $region75
              $region72: #{tpu_custom_call.1} parent=67 // loop_body
                %v404 = vld [vmem:[%s402] sm:%s395]
                %405 = vst [vmem:[%s403] sm:%s395] %v404
                %v406 = vld [vmem:[%s402 + $0x8] sm:%s395]
                %407 = vst [vmem:[%s403 + $0x8] sm:%s395] %v406
                %v408 = vld [vmem:[%s402 + $0x10] sm:%s395]
                %409 = vst [vmem:[%s403 + $0x10] sm:%s395] %v408
                %v410 = vld [vmem:[%s402 + $0x18] sm:%s395]
                %411 = vst [vmem:[%s403 + $0x18] sm:%s395] %v410
                %v412 = vld [vmem:[%s402 + $0x20] sm:%s395]
                %413 = vst [vmem:[%s403 + $0x20] sm:%s395] %v412
                %v414 = vld [vmem:[%s402 + $0x28] sm:%s395]
                %415 = vst [vmem:[%s403 + $0x28] sm:%s395] %v414
                %v416 = vld [vmem:[%s402 + $0x30] sm:%s395]
                %417 = vst [vmem:[%s403 + $0x30] sm:%s395] %v416
                %v418 = vld [vmem:[%s402 + $0x38] sm:%s395]
                %419 = vst [vmem:[%s403 + $0x38] sm:%s395] %v418
                %v420 = vld [vmem:[%s402 + $0x40] sm:%s395]
                %421 = vst [vmem:[%s403 + $0x40] sm:%s395] %v420
                %v422 = vld [vmem:[%s402 + $0x48] sm:%s395]
                %423 = vst [vmem:[%s403 + $0x48] sm:%s395] %v422
                %v424 = vld [vmem:[%s402 + $0x50] sm:%s395]
                %425 = vst [vmem:[%s403 + $0x50] sm:%s395] %v424
                %v426 = vld [vmem:[%s402 + $0x58] sm:%s395]
                %427 = vst [vmem:[%s403 + $0x58] sm:%s395] %v426
                %v428 = vld [vmem:[%s402 + $0x60] sm:%s395]
                %429 = vst [vmem:[%s403 + $0x60] sm:%s395] %v428
                %v430 = vld [vmem:[%s402 + $0x68] sm:%s395]
                %431 = vst [vmem:[%s403 + $0x68] sm:%s395] %v430
                %v432 = vld [vmem:[%s402 + $0x70] sm:%s395]
                %433 = vst [vmem:[%s403 + $0x70] sm:%s395] %v432
                %v434 = vld [vmem:[%s402 + $0x78] sm:%s395]
                %435 = vst [vmem:[%s403 + $0x78] sm:%s395] %v434
                %v436 = vld [vmem:[%s402 + $0x100] sm:%s395]
                %437 = vst [vmem:[%s403 + $0x80] sm:%s395] %v436
                %v438 = vld [vmem:[%s402 + $0x108] sm:%s395]
                %439 = vst [vmem:[%s403 + $0x88] sm:%s395] %v438
                %v440 = vld [vmem:[%s402 + $0x110] sm:%s395]
                %441 = vst [vmem:[%s403 + $0x90] sm:%s395] %v440
                %v442 = vld [vmem:[%s402 + $0x118] sm:%s395]
                %443 = vst [vmem:[%s403 + $0x98] sm:%s395] %v442
                %v444 = vld [vmem:[%s402 + $0x120] sm:%s395]
                %445 = vst [vmem:[%s403 + $0xa0] sm:%s395] %v444
                %v446 = vld [vmem:[%s402 + $0x128] sm:%s395]
                %447 = vst [vmem:[%s403 + $0xa8] sm:%s395] %v446
                %v448 = vld [vmem:[%s402 + $0x130] sm:%s395]
                %449 = vst [vmem:[%s403 + $0xb0] sm:%s395] %v448
                %v450 = vld [vmem:[%s402 + $0x138] sm:%s395]
                %451 = vst [vmem:[%s403 + $0xb8] sm:%s395] %v450
                %v452 = vld [vmem:[%s402 + $0x140] sm:%s395]
                %453 = vst [vmem:[%s403 + $0xc0] sm:%s395] %v452
                %v454 = vld [vmem:[%s402 + $0x148] sm:%s395]
                %455 = vst [vmem:[%s403 + $0xc8] sm:%s395] %v454
                %v456 = vld [vmem:[%s402 + $0x150] sm:%s395]
                %457 = vst [vmem:[%s403 + $0xd0] sm:%s395] %v456
                %v458 = vld [vmem:[%s402 + $0x158] sm:%s395]
                %459 = vst [vmem:[%s403 + $0xd8] sm:%s395] %v458
                %v460 = vld [vmem:[%s402 + $0x160] sm:%s395]
                %461 = vst [vmem:[%s403 + $0xe0] sm:%s395] %v460
                %v462 = vld [vmem:[%s402 + $0x168] sm:%s395]
                %463 = vst [vmem:[%s403 + $0xe8] sm:%s395] %v462
                %v464 = vld [vmem:[%s402 + $0x170] sm:%s395]
                %465 = vst [vmem:[%s403 + $0xf0] sm:%s395] %v464
                %v466 = vld [vmem:[%s402 + $0x178] sm:%s395]
                %467 = vst [vmem:[%s403 + $0xf8] sm:%s395] %v466
              $region73: #{tpu_custom_call.1} parent=67 // loop_footer
                %s401 = sadd.s32 1, %s397
              $region74: #{tpu_custom_call.1} parent=67 // loop_footer_branch
                %396 = sbr.rel target = $region70
              $region75: #{tpu_custom_call.1} parent=67 // loop_exit
                _
            $region68: #{tpu_custom_call.1} parent=59 // pred_fallthru
              _
          $region60: #{tpu_custom_call.1} parent=55 // pred_fallthru
            _
          %544 = vnop
        $region56: #{tpu_custom_call.1} parent=51 // pred_fallthru
          _
      $region52: #{tpu_custom_call.1} parent=5 // pred_fallthru
        _
      %p545 = scmp.le.s32.totalorder 1, %s20
      %p546 = scmp.lt.s32.totalorder %s20, 3
      %p547 = pnand %p545, %p546
      %p548 = pneg %p547
      // Predicated region
      $region91: #{tpu_custom_call.1} parent=5 // pred_check
        _
      $region92: #{tpu_custom_call.1} parent=5 // pred_check_branch
        %550 = sbr.rel (%p547) target = $region94
      $region93: #{tpu_custom_call.1} parent=5 // pred_region
        %s551 = ssub.s32 %s20, 1
        %s552 = sand.u32 %s47, 1
        %s553 = sand.u32 %s47, 1
        %s554 = smul.addr %s553, 256
        %s555 = scalar_lea.vmem [#allocation6], %s554
        // Predicated region
        $region95: #{tpu_custom_call.1} parent=93 // pred_check
          %p556 = pneg %p60
        $region96: #{tpu_custom_call.1} parent=93 // pred_check_branch
          %558 = sbr.rel (%p556) target = $region98
        $region97: #{tpu_custom_call.1} parent=93 // pred_region
          _
        $region98: #{tpu_custom_call.1} parent=93 // pred_fallthru
          _
        %s559 = sand.u32 %s47, 1
        %s560 = sand.u32 %s47, 1
        %s561 = smul.addr %s560, 256
        %s562 = scalar_lea.vmem [#allocation6], %s561
        %p563 = pneg %p60
        %p564 = pneg %p57
        %s565 = smul.u32 2, %s29
        %p566 = scmp.lt.s32.totalorder %s565, 1
        %s567 = scalar_select %p566, %s565, 1
        %s568 = scalar_lea.vmem %s1, %s567
        %p569 = pneg %p86
        %p570 = pneg %p83
        %p571 = scmp.lt.s32.totalorder %s29, 0
        %s572 = scalar_select %p571, %s29, 0
        %s573 = smul.addr %s572, 2
        %s574 = scalar_lea.vmem %s2, %s573
        %p575 = pneg %p112
        %p576 = pneg %p109
        %p577 = scmp.lt.s32.totalorder %s29, 0
        %s578 = scalar_select %p577, %s29, 0
        %s579 = smul.addr %s578, 2
        %s580 = scalar_lea.vmem %s3, %s579
        %p581 = pneg %p138
        %p582 = pneg %p135
        %p583 = pneg %p159
        %p584 = pneg %p156
        %p585 = pneg %p180
        %p586 = pneg %p177
        %p587 = pneg %p201
        %p588 = pneg %p198
        %p589 = pneg %p222
        %p590 = pneg %p219
        %p591 = pneg %p243
        %p592 = pneg %p240
        %p593 = pneg %p264
        %p594 = pneg %p261
        %p595 = pneg %p290
        %p596 = pneg %p287
        %p597 = pneg %p316
        %p598 = pneg %p313
        %s599 = smul.u32 2, %s29
        %s600 = smul.u32 16, %s30
        %s601 = smul.u32 2, %s29
        %p602 = scmp.lt.s32.totalorder %s601, 1
        %s603 = scalar_select %p602, %s601, 1
        %s604 = scalar_lea.vmem %s1, %s603
        %s605 = smul.u32 2, %s29
        %p606 = scmp.lt.s32.totalorder %s29, 0
        %s607 = scalar_select %p606, %s29, 0
        %s608 = smul.addr %s607, 2
        %s609 = scalar_lea.vmem %s2, %s608
        %p610 = scmp.lt.s32.totalorder %s29, 0
        %s611 = scalar_select %p610, %s29, 0
        %s612 = smul.addr %s611, 2
        %s613 = scalar_lea.vmem %s3, %s612
        %s614 = smul.u32 2, %s29
        %p615 = scmp.eq.s32.totalorder %s30, 0
        // Predicated region
        $region99: #{tpu_custom_call.1} parent=93 // pred_check
          %p616 = pneg %p615
        $region100: #{tpu_custom_call.1} parent=93 // pred_check_branch
          %618 = sbr.rel (%p616) target = $region102
        $region101: #{tpu_custom_call.1} parent=93 // pred_region
          %vm619 = vcmask 0
          %620 = vst.msk [vmem:[#allocation3] sm:$0x1] %vm619, -inf
          %621 = vst.msk [vmem:[#allocation3 + $0x1] sm:$0x1] %vm619, -inf
          %622 = vst.msk [vmem:[#allocation4] sm:$0x1] %vm619, 0.0
          %623 = vst.msk [vmem:[#allocation4 + $0x1] sm:$0x1] %vm619, 0.0
          %vm624 = vcmask 253952
          %625 = vst.msk [vmem:[#allocation5] sm:$0x1] %vm624, 0.0
          %626 = vst.msk [vmem:[#allocation5 + $0x1] sm:$0x1] %vm624, 0.0
        $region102: #{tpu_custom_call.1} parent=93 // pred_fallthru
          _
        %v627 = vld [vmem:[%s555] sm:$0xff]
        %v628 = vld [vmem:[%s555 + $0x8] sm:$0xff]
        %v629 = vld [vmem:[%s555 + $0x10] sm:$0xff]
        %v630 = vld [vmem:[%s555 + $0x18] sm:$0xff]
        %v631 = vld [vmem:[%s555 + $0x20] sm:$0xff]
        %v632 = vld [vmem:[%s555 + $0x28] sm:$0xff]
        %v633 = vld [vmem:[%s555 + $0x30] sm:$0xff]
        %v634 = vld [vmem:[%s555 + $0x38] sm:$0xff]
        %v635 = vld [vmem:[%s555 + $0x40] sm:$0xff]
        %v636 = vld [vmem:[%s555 + $0x48] sm:$0xff]
        %v637 = vld [vmem:[%s555 + $0x50] sm:$0xff]
        %v638 = vld [vmem:[%s555 + $0x58] sm:$0xff]
        %v639 = vld [vmem:[%s555 + $0x60] sm:$0xff]
        %v640 = vld [vmem:[%s555 + $0x68] sm:$0xff]
        %v641 = vld [vmem:[%s555 + $0x70] sm:$0xff]
        %v642 = vld [vmem:[%s555 + $0x78] sm:$0xff]
        %v643 = vld [vmem:[%s555 + $0x80] sm:$0xff]
        %v644 = vld [vmem:[%s555 + $0x88] sm:$0xff]
        %v645 = vld [vmem:[%s555 + $0x90] sm:$0xff]
        %v646 = vld [vmem:[%s555 + $0x98] sm:$0xff]
        %v647 = vld [vmem:[%s555 + $0xa0] sm:$0xff]
        %v648 = vld [vmem:[%s555 + $0xa8] sm:$0xff]
        %v649 = vld [vmem:[%s555 + $0xb0] sm:$0xff]
        %v650 = vld [vmem:[%s555 + $0xb8] sm:$0xff]
        %v651 = vld [vmem:[%s555 + $0xc0] sm:$0xff]
        %v652 = vld [vmem:[%s555 + $0xc8] sm:$0xff]
        %v653 = vld [vmem:[%s555 + $0xd0] sm:$0xff]
        %v654 = vld [vmem:[%s555 + $0xd8] sm:$0xff]
        %v655 = vld [vmem:[%s555 + $0xe0] sm:$0xff]
        %v656 = vld [vmem:[%s555 + $0xe8] sm:$0xff]
        %v657 = vld [vmem:[%s555 + $0xf0] sm:$0xff]
        %v658 = vld [vmem:[%s555 + $0xf8] sm:$0xff]
        %v659 = vld [vmem:[%s4] sm:$0xff]
        %v660 = vld [vmem:[%s4 + $0x8] sm:$0xff]
        %v661 = vld [vmem:[%s4 + $0x10] sm:$0xff]
        %v662 = vld [vmem:[%s4 + $0x18] sm:$0xff]
        %vm663 = vcmask 261120
        %v665 = vsel %vm663, %v627, 0
        %v668 = vsel %vm663, %v628, 0
        %v671 = vsel %vm663, %v629, 0
        %v674 = vsel %vm663, %v630, 0
        %v677 = vsel %vm663, %v631, 0
        %v680 = vsel %vm663, %v632, 0
        %v683 = vsel %vm663, %v633, 0
        %v686 = vsel %vm663, %v634, 0
        %v689 = vsel %vm663, %v635, 0
        %v692 = vsel %vm663, %v636, 0
        %v695 = vsel %vm663, %v637, 0
        %v698 = vsel %vm663, %v638, 0
        %v701 = vsel %vm663, %v639, 0
        %v704 = vsel %vm663, %v640, 0
        %v707 = vsel %vm663, %v641, 0
        %v710 = vsel %vm663, %v642, 0
        %v713 = vsel %vm663, %v643, 0
        %v716 = vsel %vm663, %v644, 0
        %v719 = vsel %vm663, %v645, 0
        %v722 = vsel %vm663, %v646, 0
        %v725 = vsel %vm663, %v647, 0
        %v728 = vsel %vm663, %v648, 0
        %v731 = vsel %vm663, %v649, 0
        %v734 = vsel %vm663, %v650, 0
        %v737 = vsel %vm663, %v651, 0
        %v740 = vsel %vm663, %v652, 0
        %v743 = vsel %vm663, %v653, 0
        %v746 = vsel %vm663, %v654, 0
        %v749 = vsel %vm663, %v655, 0
        %v752 = vsel %vm663, %v656, 0
        %v755 = vsel %vm663, %v657, 0
        %v758 = vsel %vm663, %v658, 0
        %760 = vmatprep.subr.mxu0 0.0
        %761 = vmatpush1.msra.mxu0 0.0
        %762 = vmatprep.subr.mxu0 0.0
        %763 = vmatpush1.msra.mxu0 0.0
        %764 = vmatprep.subr.mxu0 0.0
        %765 = vmatpush1.msra.mxu0 0.0
        %766 = vmatprep.subr.mxu0 0.0
        %767 = vmatpush1.msra.mxu0 0.0
        %768 = vmatprep.subr.mxu0 0.0
        %769 = vmatpush1.msra.mxu0 0.0
        %770 = vmatprep.subr.mxu0 0.0
        %771 = vmatpush1.msra.mxu0 0.0
        %772 = vmatprep.subr.mxu0 0.0
        %773 = vmatpush1.msra.mxu0 0.0
        %774 = vmatprep.subr.mxu0 0.0
        %775 = vmatpush1.msra.mxu0 0.0
        %776 = vmatprep.subr.mxu0 0.0
        %777 = vmatpush1.msra.mxu0 0.0
        %778 = vmatprep.subr.mxu0 0.0
        %779 = vmatpush1.msra.mxu0 0.0
        %780 = vmatprep.subr.mxu0 0.0
        %781 = vmatpush1.msra.mxu0 0.0
        %782 = vmatprep.subr.mxu0 0.0
        %783 = vmatpush1.msra.mxu0 0.0
        %784 = vmatprep.subr.mxu0 0.0
        %785 = vmatpush1.msra.mxu0 %v662
        %786 = vmatprep.subr.mxu0 0.0
        %787 = vmatpush1.msra.mxu0 %v661
        %788 = vmatprep.subr.mxu0 0.0
        %789 = vmatpush1.msra.mxu0 %v660
        %790 = vmatprep.subr.mxu0 0.0
        %791 = vmatpush1.msra.mxu0 %v659
        %792 = vmatprep.subr.mxu0 0.0
        %793 = vmatpush2.msra.mxu0 0.0
        %794 = vmatprep.subr.mxu0 0.0
        %795 = vmatpush2.msra.mxu0 0.0
        %796 = vmatprep.subr.mxu0 0.0
        %797 = vmatpush2.msra.mxu0 0.0
        %798 = vmatprep.subr.mxu0 0.0
        %799 = vmatpush2.msra.mxu0 0.0
        %800 = vmatprep.subr.mxu0 0.0
        %801 = vmatpush2.msra.mxu0 0.0
        %802 = vmatprep.subr.mxu0 0.0
        %803 = vmatpush2.msra.mxu0 0.0
        %804 = vmatprep.subr.mxu0 0.0
        %805 = vmatpush2.msra.mxu0 0.0
        %806 = vmatprep.subr.mxu0 0.0
        %807 = vmatpush2.msra.mxu0 0.0
        %808 = vmatprep.subr.mxu0 0.0
        %809 = vmatpush2.msra.mxu0 0.0
        %810 = vmatprep.subr.mxu0 0.0
        %811 = vmatpush2.msra.mxu0 0.0
        %812 = vmatprep.subr.mxu0 0.0
        %813 = vmatpush2.msra.mxu0 0.0
        %814 = vmatprep.subr.mxu0 0.0
        %815 = vmatpush2.msra.mxu0 0.0
        %816 = vmatprep.subr.mxu0 0.0
        %817 = vmatpush2.msra.mxu0 0.0
        %818 = vmatprep.subr.mxu0 0.0
        %819 = vmatpush2.msra.mxu0 0.0
        %820 = vmatprep.subr.mxu0 0.0
        %821 = vmatpush2.msra.mxu0 0.0
        %822 = vmatprep.subr.mxu0 0.0
        %823 = vmatpush2.msra.mxu0 0.0
        %824 = vmatprep.mubr.f32.mxu0 0.0
        %825 = vmatmul.mubr.f32.gmra.mxu0 %v665
        %v826 = vpop.f32.mrf.mxu0
        %v827 = vadd.f32 0.0, %v826
        %v828 = vpop.f32.mrf.mxu0
        %829 = vmatprep.mubr.f32.mxu0 0.0
        %830 = vmatmul.mubr.f32.gmra.mxu0 %v668
        %v831 = vpop.f32.mrf.mxu0
        %v832 = vadd.f32 0.0, %v831
        %v833 = vpop.f32.mrf.mxu0
        %834 = vmatprep.mubr.f32.mxu0 0.0
        %835 = vmatmul.mubr.f32.gmra.mxu0 %v671
        %v836 = vpop.f32.mrf.mxu0
        %v837 = vadd.f32 0.0, %v836
        %v838 = vpop.f32.mrf.mxu0
        %839 = vmatprep.mubr.f32.mxu0 0.0
        %840 = vmatmul.mubr.f32.gmra.mxu0 %v674
        %v841 = vpop.f32.mrf.mxu0
        %v842 = vadd.f32 0.0, %v841
        %v843 = vpop.f32.mrf.mxu0
        %844 = vmatprep.mubr.f32.mxu0 0.0
        %845 = vmatmul.mubr.f32.gmra.mxu0 %v677
        %v846 = vpop.f32.mrf.mxu0
        %v847 = vadd.f32 0.0, %v846
        %v848 = vpop.f32.mrf.mxu0
        %849 = vmatprep.mubr.f32.mxu0 0.0
        %850 = vmatmul.mubr.f32.gmra.mxu0 %v680
        %v851 = vpop.f32.mrf.mxu0
        %v852 = vadd.f32 0.0, %v851
        %v853 = vpop.f32.mrf.mxu0
        %854 = vmatprep.mubr.f32.mxu0 0.0
        %855 = vmatmul.mubr.f32.gmra.mxu0 %v683
        %v856 = vpop.f32.mrf.mxu0
        %v857 = vadd.f32 0.0, %v856
        %v858 = vpop.f32.mrf.mxu0
        %859 = vmatprep.mubr.f32.mxu0 0.0
        %860 = vmatmul.mubr.f32.gmra.mxu0 %v686
        %v861 = vpop.f32.mrf.mxu0
        %v862 = vadd.f32 0.0, %v861
        %v863 = vpop.f32.mrf.mxu0
        %864 = vmatprep.mubr.f32.mxu0 0.0
        %865 = vmatmul.mubr.f32.gmra.mxu0 %v689
        %v866 = vpop.f32.mrf.mxu0
        %v867 = vadd.f32 0.0, %v866
        %v868 = vpop.f32.mrf.mxu0
        %869 = vmatprep.mubr.f32.mxu0 0.0
        %870 = vmatmul.mubr.f32.gmra.mxu0 %v692
        %v871 = vpop.f32.mrf.mxu0
        %v872 = vadd.f32 0.0, %v871
        %v873 = vpop.f32.mrf.mxu0
        %874 = vmatprep.mubr.f32.mxu0 0.0
        %875 = vmatmul.mubr.f32.gmra.mxu0 %v695
        %v876 = vpop.f32.mrf.mxu0
        %v877 = vadd.f32 0.0, %v876
        %v878 = vpop.f32.mrf.mxu0
        %879 = vmatprep.mubr.f32.mxu0 0.0
        %880 = vmatmul.mubr.f32.gmra.mxu0 %v698
        %v881 = vpop.f32.mrf.mxu0
        %v882 = vadd.f32 0.0, %v881
        %v883 = vpop.f32.mrf.mxu0
        %884 = vmatprep.mubr.f32.mxu0 0.0
        %885 = vmatmul.mubr.f32.gmra.mxu0 %v701
        %v886 = vpop.f32.mrf.mxu0
        %v887 = vadd.f32 0.0, %v886
        %v888 = vpop.f32.mrf.mxu0
        %889 = vmatprep.mubr.f32.mxu0 0.0
        %890 = vmatmul.mubr.f32.gmra.mxu0 %v704
        %v891 = vpop.f32.mrf.mxu0
        %v892 = vadd.f32 0.0, %v891
        %v893 = vpop.f32.mrf.mxu0
        %894 = vmatprep.mubr.f32.mxu0 0.0
        %895 = vmatmul.mubr.f32.gmra.mxu0 %v707
        %v896 = vpop.f32.mrf.mxu0
        %v897 = vadd.f32 0.0, %v896
        %v898 = vpop.f32.mrf.mxu0
        %899 = vmatprep.mubr.f32.mxu0 0.0
        %900 = vmatmul.mubr.f32.gmra.mxu0 %v710
        %v901 = vpop.f32.mrf.mxu0
        %v902 = vadd.f32 0.0, %v901
        %v903 = vpop.f32.mrf.mxu0
        %904 = vmatprep.mubr.f32.mxu0 0.0
        %905 = vmatmul.mubr.f32.gmra.mxu0 %v713
        %v906 = vpop.f32.mrf.mxu0
        %v907 = vadd.f32 0.0, %v906
        %v908 = vpop.f32.mrf.mxu0
        %909 = vmatprep.mubr.f32.mxu0 0.0
        %910 = vmatmul.mubr.f32.gmra.mxu0 %v716
        %v911 = vpop.f32.mrf.mxu0
        %v912 = vadd.f32 0.0, %v911
        %v913 = vpop.f32.mrf.mxu0
        %914 = vmatprep.mubr.f32.mxu0 0.0
        %915 = vmatmul.mubr.f32.gmra.mxu0 %v719
        %v916 = vpop.f32.mrf.mxu0
        %v917 = vadd.f32 0.0, %v916
        %v918 = vpop.f32.mrf.mxu0
        %919 = vmatprep.mubr.f32.mxu0 0.0
        %920 = vmatmul.mubr.f32.gmra.mxu0 %v722
        %v921 = vpop.f32.mrf.mxu0
        %v922 = vadd.f32 0.0, %v921
        %v923 = vpop.f32.mrf.mxu0
        %924 = vmatprep.mubr.f32.mxu0 0.0
        %925 = vmatmul.mubr.f32.gmra.mxu0 %v725
        %v926 = vpop.f32.mrf.mxu0
        %v927 = vadd.f32 0.0, %v926
        %v928 = vpop.f32.mrf.mxu0
        %929 = vmatprep.mubr.f32.mxu0 0.0
        %930 = vmatmul.mubr.f32.gmra.mxu0 %v728
        %v931 = vpop.f32.mrf.mxu0
        %v932 = vadd.f32 0.0, %v931
        %v933 = vpop.f32.mrf.mxu0
        %934 = vmatprep.mubr.f32.mxu0 0.0
        %935 = vmatmul.mubr.f32.gmra.mxu0 %v731
        %v936 = vpop.f32.mrf.mxu0
        %v937 = vadd.f32 0.0, %v936
        %v938 = vpop.f32.mrf.mxu0
        %939 = vmatprep.mubr.f32.mxu0 0.0
        %940 = vmatmul.mubr.f32.gmra.mxu0 %v734
        %v941 = vpop.f32.mrf.mxu0
        %v942 = vadd.f32 0.0, %v941
        %v943 = vpop.f32.mrf.mxu0
        %944 = vmatprep.mubr.f32.mxu0 0.0
        %945 = vmatmul.mubr.f32.gmra.mxu0 %v737
        %v946 = vpop.f32.mrf.mxu0
        %v947 = vadd.f32 0.0, %v946
        %v948 = vpop.f32.mrf.mxu0
        %949 = vmatprep.mubr.f32.mxu0 0.0
        %950 = vmatmul.mubr.f32.gmra.mxu0 %v740
        %v951 = vpop.f32.mrf.mxu0
        %v952 = vadd.f32 0.0, %v951
        %v953 = vpop.f32.mrf.mxu0
        %954 = vmatprep.mubr.f32.mxu0 0.0
        %955 = vmatmul.mubr.f32.gmra.mxu0 %v743
        %v956 = vpop.f32.mrf.mxu0
        %v957 = vadd.f32 0.0, %v956
        %v958 = vpop.f32.mrf.mxu0
        %959 = vmatprep.mubr.f32.mxu0 0.0
        %960 = vmatmul.mubr.f32.gmra.mxu0 %v746
        %v961 = vpop.f32.mrf.mxu0
        %v962 = vadd.f32 0.0, %v961
        %v963 = vpop.f32.mrf.mxu0
        %964 = vmatprep.mubr.f32.mxu0 0.0
        %965 = vmatmul.mubr.f32.gmra.mxu0 %v749
        %v966 = vpop.f32.mrf.mxu0
        %v967 = vadd.f32 0.0, %v966
        %v968 = vpop.f32.mrf.mxu0
        %969 = vmatprep.mubr.f32.mxu0 0.0
        %970 = vmatmul.mubr.f32.gmra.mxu0 %v752
        %v971 = vpop.f32.mrf.mxu0
        %v972 = vadd.f32 0.0, %v971
        %v973 = vpop.f32.mrf.mxu0
        %974 = vmatprep.mubr.f32.mxu0 0.0
        %975 = vmatmul.mubr.f32.gmra.mxu0 %v755
        %v976 = vpop.f32.mrf.mxu0
        %v977 = vadd.f32 0.0, %v976
        %v978 = vpop.f32.mrf.mxu0
        %979 = vmatprep.mubr.f32.mxu0 0.0
        %980 = vmatmul.mubr.f32.gmra.mxu0 %v758
        %v981 = vpop.f32.mrf.mxu0
        %v982 = vadd.f32 0.0, %v981
        %v983 = vpop.f32.mrf.mxu0
        %984 = vdwg.mxu0
        %v985 = vld [vmem:[%s604] sm:$0x1]
        %v986 = vld [vmem:[%s604 + $0x1] sm:$0x1]
        %v989 = vlaneseq
        %v990 = vshrl.u32 %v989, 7
        %v991 = vsub.s32 0, %v990
        %v992 = vrot.slane %v985, %v991
        %v993 = vlaneseq
        %v994 = vshrl.u32 %v993, 7
        %v995 = vsub.s32 0, %v994
        %v996 = vrot.slane %v986, %v995
        %v999 = vadd.f32 %v827, %v992
        %v1000 = vadd.f32 %v832, %v992
        %v1001 = vadd.f32 %v837, %v992
        %v1002 = vadd.f32 %v842, %v992
        %v1003 = vadd.f32 %v847, %v992
        %v1004 = vadd.f32 %v852, %v992
        %v1005 = vadd.f32 %v857, %v992
        %v1006 = vadd.f32 %v862, %v992
        %v1007 = vadd.f32 %v867, %v992
        %v1008 = vadd.f32 %v872, %v992
        %v1009 = vadd.f32 %v877, %v992
        %v1010 = vadd.f32 %v882, %v992
        %v1011 = vadd.f32 %v887, %v992
        %v1012 = vadd.f32 %v892, %v992
        %v1013 = vadd.f32 %v897, %v992
        %v1014 = vadd.f32 %v902, %v992
        %v1015 = vadd.f32 %v907, %v996
        %v1016 = vadd.f32 %v912, %v996
        %v1017 = vadd.f32 %v917, %v996
        %v1018 = vadd.f32 %v922, %v996
        %v1019 = vadd.f32 %v927, %v996
        %v1020 = vadd.f32 %v932, %v996
        %v1021 = vadd.f32 %v937, %v996
        %v1022 = vadd.f32 %v942, %v996
        %v1023 = vadd.f32 %v947, %v996
        %v1024 = vadd.f32 %v952, %v996
        %v1025 = vadd.f32 %v957, %v996
        %v1026 = vadd.f32 %v962, %v996
        %v1027 = vadd.f32 %v967, %v996
        %v1028 = vadd.f32 %v972, %v996
        %v1029 = vadd.f32 %v977, %v996
        %v1030 = vadd.f32 %v982, %v996
        %v1031 = vtanh.pop %v999
        %v1032 = vtanh.pop %v1000
        %v1033 = vtanh.pop %v1001
        %v1034 = vtanh.pop %v1002
        %v1035 = vtanh.pop %v1003
        %v1036 = vtanh.pop %v1004
        %v1037 = vtanh.pop %v1005
        %v1038 = vtanh.pop %v1006
        %v1039 = vtanh.pop %v1007
        %v1040 = vtanh.pop %v1008
        %v1041 = vtanh.pop %v1009
        %v1042 = vtanh.pop %v1010
        %v1043 = vtanh.pop %v1011
        %v1044 = vtanh.pop %v1012
        %v1045 = vtanh.pop %v1013
        %v1046 = vtanh.pop %v1014
        %v1047 = vtanh.pop %v1015
        %v1048 = vtanh.pop %v1016
        %v1049 = vtanh.pop %v1017
        %v1050 = vtanh.pop %v1018
        %v1051 = vtanh.pop %v1019
        %v1052 = vtanh.pop %v1020
        %v1053 = vtanh.pop %v1021
        %v1054 = vtanh.pop %v1022
        %v1055 = vtanh.pop %v1023
        %v1056 = vtanh.pop %v1024
        %v1057 = vtanh.pop %v1025
        %v1058 = vtanh.pop %v1026
        %v1059 = vtanh.pop %v1027
        %v1060 = vtanh.pop %v1028
        %v1061 = vtanh.pop %v1029
        %v1062 = vtanh.pop %v1030
        %v1063 = vld [vmem:[%s5] sm:$0x1]
        %v1065 = vsel %vm663, %v1063, 0
        %v1068 = vsel %vm663, %v1031, 0
        %v1071 = vsel %vm663, %v1032, 0
        %v1074 = vsel %vm663, %v1033, 0
        %v1077 = vsel %vm663, %v1034, 0
        %v1080 = vsel %vm663, %v1035, 0
        %v1083 = vsel %vm663, %v1036, 0
        %v1086 = vsel %vm663, %v1037, 0
        %v1089 = vsel %vm663, %v1038, 0
        %v1092 = vsel %vm663, %v1039, 0
        %v1095 = vsel %vm663, %v1040, 0
        %v1098 = vsel %vm663, %v1041, 0
        %v1101 = vsel %vm663, %v1042, 0
        %v1104 = vsel %vm663, %v1043, 0
        %v1107 = vsel %vm663, %v1044, 0
        %v1110 = vsel %vm663, %v1045, 0
        %v1113 = vsel %vm663, %v1046, 0
        %1115 = vmatprep.subr.mxu0 0.0
        %1116 = vmatpush1.xpose.msra.mxu0 %v1113
        %1117 = vmatprep.subr.mxu0 0.0
        %1118 = vmatpush1.xpose.msra.mxu0 %v1110
        %1119 = vmatprep.subr.mxu0 0.0
        %1120 = vmatpush1.xpose.msra.mxu0 %v1107
        %1121 = vmatprep.subr.mxu0 0.0
        %1122 = vmatpush1.xpose.msra.mxu0 %v1104
        %1123 = vmatprep.subr.mxu0 0.0
        %1124 = vmatpush1.xpose.msra.mxu0 %v1101
        %1125 = vmatprep.subr.mxu0 0.0
        %1126 = vmatpush1.xpose.msra.mxu0 %v1098
        %1127 = vmatprep.subr.mxu0 0.0
        %1128 = vmatpush1.xpose.msra.mxu0 %v1095
        %1129 = vmatprep.subr.mxu0 0.0
        %1130 = vmatpush1.xpose.msra.mxu0 %v1092
        %1131 = vmatprep.subr.mxu0 0.0
        %1132 = vmatpush1.xpose.msra.mxu0 %v1089
        %1133 = vmatprep.subr.mxu0 0.0
        %1134 = vmatpush1.xpose.msra.mxu0 %v1086
        %1135 = vmatprep.subr.mxu0 0.0
        %1136 = vmatpush1.xpose.msra.mxu0 %v1083
        %1137 = vmatprep.subr.mxu0 0.0
        %1138 = vmatpush1.xpose.msra.mxu0 %v1080
        %1139 = vmatprep.subr.mxu0 0.0
        %1140 = vmatpush1.xpose.msra.mxu0 %v1077
        %1141 = vmatprep.subr.mxu0 0.0
        %1142 = vmatpush1.xpose.msra.mxu0 %v1074
        %1143 = vmatprep.subr.mxu0 0.0
        %1144 = vmatpush1.xpose.msra.mxu0 %v1071
        %1145 = vmatprep.subr.mxu0 0.0
        %1146 = vmatpush1.xpose.msra.mxu0 %v1068
        %1147 = vmatprep.subr.mxu0 0.0
        %1148 = vmatpush2.xpose.msra.mxu0 0.0
        %1149 = vmatprep.subr.mxu0 0.0
        %1150 = vmatpush2.xpose.msra.mxu0 0.0
        %1151 = vmatprep.subr.mxu0 0.0
        %1152 = vmatpush2.xpose.msra.mxu0 0.0
        %1153 = vmatprep.subr.mxu0 0.0
        %1154 = vmatpush2.xpose.msra.mxu0 0.0
        %1155 = vmatprep.subr.mxu0 0.0
        %1156 = vmatpush2.xpose.msra.mxu0 0.0
        %1157 = vmatprep.subr.mxu0 0.0
        %1158 = vmatpush2.xpose.msra.mxu0 0.0
        %1159 = vmatprep.subr.mxu0 0.0
        %1160 = vmatpush2.xpose.msra.mxu0 0.0
        %1161 = vmatprep.subr.mxu0 0.0
        %1162 = vmatpush2.xpose.msra.mxu0 0.0
        %1163 = vmatprep.subr.mxu0 0.0
        %1164 = vmatpush2.xpose.msra.mxu0 0.0
        %1165 = vmatprep.subr.mxu0 0.0
        %1166 = vmatpush2.xpose.msra.mxu0 0.0
        %1167 = vmatprep.subr.mxu0 0.0
        %1168 = vmatpush2.xpose.msra.mxu0 0.0
        %1169 = vmatprep.subr.mxu0 0.0
        %1170 = vmatpush2.xpose.msra.mxu0 0.0
        %1171 = vmatprep.subr.mxu0 0.0
        %1172 = vmatpush2.xpose.msra.mxu0 0.0
        %1173 = vmatprep.subr.mxu0 0.0
        %1174 = vmatpush2.xpose.msra.mxu0 0.0
        %1175 = vmatprep.subr.mxu0 0.0
        %1176 = vmatpush2.xpose.msra.mxu0 0.0
        %1177 = vmatprep.subr.mxu0 0.0
        %1178 = vmatpush2.xpose.msra.mxu0 0.0
        %1179 = vmatprep.mubr.f32.mxu0 0.0
        %1180 = vmatmul.mubr.f32.gmra.mxu0 %v1065
        %v1181 = vpop.f32.mrf.mxu0
        %v1182 = vadd.f32 0.0, %v1181
        %v1183 = vpop.f32.mrf.mxu0
        %1184 = vdwg.mxu0
        %v1186 = vsel %vm663, %v1047, 0
        %v1189 = vsel %vm663, %v1048, 0
        %v1192 = vsel %vm663, %v1049, 0
        %v1195 = vsel %vm663, %v1050, 0
        %v1198 = vsel %vm663, %v1051, 0
        %v1201 = vsel %vm663, %v1052, 0
        %v1204 = vsel %vm663, %v1053, 0
        %v1207 = vsel %vm663, %v1054, 0
        %v1210 = vsel %vm663, %v1055, 0
        %v1213 = vsel %vm663, %v1056, 0
        %v1216 = vsel %vm663, %v1057, 0
        %v1219 = vsel %vm663, %v1058, 0
        %v1222 = vsel %vm663, %v1059, 0
        %v1225 = vsel %vm663, %v1060, 0
        %v1228 = vsel %vm663, %v1061, 0
        %v1231 = vsel %vm663, %v1062, 0
        %1233 = vmatprep.subr.mxu0 0.0
        %1234 = vmatpush1.xpose.msra.mxu0 %v1231
        %1235 = vmatprep.subr.mxu0 0.0
        %1236 = vmatpush1.xpose.msra.mxu0 %v1228
        %1237 = vmatprep.subr.mxu0 0.0
        %1238 = vmatpush1.xpose.msra.mxu0 %v1225
        %1239 = vmatprep.subr.mxu0 0.0
        %1240 = vmatpush1.xpose.msra.mxu0 %v1222
        %1241 = vmatprep.subr.mxu0 0.0
        %1242 = vmatpush1.xpose.msra.mxu0 %v1219
        %1243 = vmatprep.subr.mxu0 0.0
        %1244 = vmatpush1.xpose.msra.mxu0 %v1216
        %1245 = vmatprep.subr.mxu0 0.0
        %1246 = vmatpush1.xpose.msra.mxu0 %v1213
        %1247 = vmatprep.subr.mxu0 0.0
        %1248 = vmatpush1.xpose.msra.mxu0 %v1210
        %1249 = vmatprep.subr.mxu0 0.0
        %1250 = vmatpush1.xpose.msra.mxu0 %v1207
        %1251 = vmatprep.subr.mxu0 0.0
        %1252 = vmatpush1.xpose.msra.mxu0 %v1204
        %1253 = vmatprep.subr.mxu0 0.0
        %1254 = vmatpush1.xpose.msra.mxu0 %v1201
        %1255 = vmatprep.subr.mxu0 0.0
        %1256 = vmatpush1.xpose.msra.mxu0 %v1198
        %1257 = vmatprep.subr.mxu0 0.0
        %1258 = vmatpush1.xpose.msra.mxu0 %v1195
        %1259 = vmatprep.subr.mxu0 0.0
        %1260 = vmatpush1.xpose.msra.mxu0 %v1192
        %1261 = vmatprep.subr.mxu0 0.0
        %1262 = vmatpush1.xpose.msra.mxu0 %v1189
        %1263 = vmatprep.subr.mxu0 0.0
        %1264 = vmatpush1.xpose.msra.mxu0 %v1186
        %1265 = vmatprep.subr.mxu0 0.0
        %1266 = vmatpush2.xpose.msra.mxu0 0.0
        %1267 = vmatprep.subr.mxu0 0.0
        %1268 = vmatpush2.xpose.msra.mxu0 0.0
        %1269 = vmatprep.subr.mxu0 0.0
        %1270 = vmatpush2.xpose.msra.mxu0 0.0
        %1271 = vmatprep.subr.mxu0 0.0
        %1272 = vmatpush2.xpose.msra.mxu0 0.0
        %1273 = vmatprep.subr.mxu0 0.0
        %1274 = vmatpush2.xpose.msra.mxu0 0.0
        %1275 = vmatprep.subr.mxu0 0.0
        %1276 = vmatpush2.xpose.msra.mxu0 0.0
        %1277 = vmatprep.subr.mxu0 0.0
        %1278 = vmatpush2.xpose.msra.mxu0 0.0
        %1279 = vmatprep.subr.mxu0 0.0
        %1280 = vmatpush2.xpose.msra.mxu0 0.0
        %1281 = vmatprep.subr.mxu0 0.0
        %1282 = vmatpush2.xpose.msra.mxu0 0.0
        %1283 = vmatprep.subr.mxu0 0.0
        %1284 = vmatpush2.xpose.msra.mxu0 0.0
        %1285 = vmatprep.subr.mxu0 0.0
        %1286 = vmatpush2.xpose.msra.mxu0 0.0
        %1287 = vmatprep.subr.mxu0 0.0
        %1288 = vmatpush2.xpose.msra.mxu0 0.0
        %1289 = vmatprep.subr.mxu0 0.0
        %1290 = vmatpush2.xpose.msra.mxu0 0.0
        %1291 = vmatprep.subr.mxu0 0.0
        %1292 = vmatpush2.xpose.msra.mxu0 0.0
        %1293 = vmatprep.subr.mxu0 0.0
        %1294 = vmatpush2.xpose.msra.mxu0 0.0
        %1295 = vmatprep.subr.mxu0 0.0
        %1296 = vmatpush2.xpose.msra.mxu0 0.0
        %1297 = vmatprep.mubr.f32.mxu0 0.0
        %1298 = vmatmul.mubr.f32.gmra.mxu0 %v1065
        %v1299 = vpop.f32.mrf.mxu0
        %v1300 = vadd.f32 0.0, %v1299
        %v1301 = vpop.f32.mrf.mxu0
        %1302 = vdwg.mxu0
        %s1303 = smul.u32 %s30, 2
        %s1304 = scalar_lea.vmem [#allocation2], %s1303
        %1305 = vst [vmem:[%s1304] sm:$0x1] %v1182
        %1306 = vst [vmem:[%s1304 + $0x1] sm:$0x1] %v1300
        %v1307 = vld [vmem:[#allocation3] sm:$0x1]
        %v1308 = vld [vmem:[#allocation3 + $0x1] sm:$0x1]
        %vm1309 = vcmask 1040384
        %v1310 = vsel %vm1309, %v1182, -inf
        %1311 = vmax.xlane.f32.xlu0 %v1310
        %v1312 = vpop.xlane.xlu0 %1311
        %v1313 = vsel %vm1309, %v1300, -inf
        %1314 = vmax.xlane.f32.xlu0 %v1313
        %v1315 = vpop.xlane.xlu0 %1314
        %v1316 = vmax.f32 %v1307, %v1312
        %v1317 = vmax.f32 %v1308, %v1315
        %v1318 = vsub.f32 %v1307, %v1316
        %v1319 = vsub.f32 %v1308, %v1317
        %v1320 = vmul.f32 %v1318, 1.442695
        %v1321 = vpow.pop %v1320
        %v1322 = vmul.f32 %v1319, 1.442695
        %v1323 = vpow.pop %v1322
        %1325 = vset.pattern.permute.xlu0 0
        %1326 = vperm.xlu0 %1325, %v1316
        %v1327 = vpop.permute.xlu0 %1326
        %v1329 = vlaneseq
        %v1330 = vshrl.u32 %v1329, 7
        %v1331 = vsub.s32 0, %v1330
        %v1332 = vrot.slane %v1327, %v1331
        %1334 = vset.pattern.permute.xlu0 0
        %1335 = vperm.xlu0 %1334, %v1317
        %v1336 = vpop.permute.xlu0 %1335
        %v1338 = vlaneseq
        %v1339 = vshrl.u32 %v1338, 7
        %v1340 = vsub.s32 0, %v1339
        %v1341 = vrot.slane %v1336, %v1340
        %v1342 = vsub.f32 %v1182, %v1332
        %v1343 = vsub.f32 %v1300, %v1341
        %v1344 = vmul.f32 %v1342, 1.442695
        %v1345 = vpow.pop %v1344
        %v1346 = vmul.f32 %v1343, 1.442695
        %v1347 = vpow.pop %v1346
        %v1348 = vld [vmem:[#allocation4] sm:$0x1]
        %v1349 = vld [vmem:[#allocation4 + $0x1] sm:$0x1]
        %v1350 = vmul.f32 %v1348, %v1321
        %v1351 = vmul.f32 %v1349, %v1323
        %v1352 = vsel %vm1309, %v1345, 0.0
        %1353 = vadd.xlane.f32.xlu0 %v1352
        %v1354 = vpop.xlane.xlu0 %1353
        %v1355 = vsel %vm1309, %v1347, 0.0
        %1356 = vadd.xlane.f32.xlu0 %v1355
        %v1357 = vpop.xlane.xlu0 %1356
        %v1358 = vadd.f32 %v1350, %v1354
        %v1359 = vadd.f32 %v1351, %v1357
        %vm1360 = vcmask 0
        %1361 = vst.msk [vmem:[#allocation4] sm:$0x1] %vm1360, %v1358
        %1362 = vst.msk [vmem:[#allocation4 + $0x1] sm:$0x1] %vm1360, %v1359
        %v1363 = vld [vmem:[#allocation5] sm:$0x1]
        %v1364 = vld [vmem:[#allocation5 + $0x1] sm:$0x1]
        %1366 = vset.pattern.permute.xlu0 0
        %1367 = vperm.xlu0 %1366, %v1321
        %v1368 = vpop.permute.xlu0 %1367
        %v1370 = vlaneseq
        %v1371 = vshrl.u32 %v1370, 7
        %v1372 = vsub.s32 0, %v1371
        %v1373 = vrot.slane %v1368, %v1372
        %1375 = vset.pattern.permute.xlu0 0
        %1376 = vperm.xlu0 %1375, %v1323
        %v1377 = vpop.permute.xlu0 %1376
        %v1379 = vlaneseq
        %v1380 = vshrl.u32 %v1379, 7
        %v1381 = vsub.s32 0, %v1380
        %v1382 = vrot.slane %v1377, %v1381
        %v1383 = vmul.f32 %v1363, %v1373
        %v1384 = vmul.f32 %v1364, %v1382
        %1385 = vmatprep.subr.mxu0 0.0
        %1386 = vmatpush1.msra.mxu0 %v642
        %1387 = vmatprep.subr.mxu0 0.0
        %1388 = vmatpush1.msra.mxu0 %v641
        %1389 = vmatprep.subr.mxu0 0.0
        %1390 = vmatpush1.msra.mxu0 %v640
        %1391 = vmatprep.subr.mxu0 0.0
        %1392 = vmatpush1.msra.mxu0 %v639
        %1393 = vmatprep.subr.mxu0 0.0
        %1394 = vmatpush1.msra.mxu0 %v638
        %1395 = vmatprep.subr.mxu0 0.0
        %1396 = vmatpush1.msra.mxu0 %v637
        %1397 = vmatprep.subr.mxu0 0.0
        %1398 = vmatpush1.msra.mxu0 %v636
        %1399 = vmatprep.subr.mxu0 0.0
        %1400 = vmatpush1.msra.mxu0 %v635
        %1401 = vmatprep.subr.mxu0 0.0
        %1402 = vmatpush1.msra.mxu0 %v634
        %1403 = vmatprep.subr.mxu0 0.0
        %1404 = vmatpush1.msra.mxu0 %v633
        %1405 = vmatprep.subr.mxu0 0.0
        %1406 = vmatpush1.msra.mxu0 %v632
        %1407 = vmatprep.subr.mxu0 0.0
        %1408 = vmatpush1.msra.mxu0 %v631
        %1409 = vmatprep.subr.mxu0 0.0
        %1410 = vmatpush1.msra.mxu0 %v630
        %1411 = vmatprep.subr.mxu0 0.0
        %1412 = vmatpush1.msra.mxu0 %v629
        %1413 = vmatprep.subr.mxu0 0.0
        %1414 = vmatpush1.msra.mxu0 %v628
        %1415 = vmatprep.subr.mxu0 0.0
        %1416 = vmatpush1.msra.mxu0 %v627
        %1417 = vmatprep.subr.mxu0 0.0
        %1418 = vmatpush2.msra.mxu0 0.0
        %1419 = vmatprep.subr.mxu0 0.0
        %1420 = vmatpush2.msra.mxu0 0.0
        %1421 = vmatprep.subr.mxu0 0.0
        %1422 = vmatpush2.msra.mxu0 0.0
        %1423 = vmatprep.subr.mxu0 0.0
        %1424 = vmatpush2.msra.mxu0 0.0
        %1425 = vmatprep.subr.mxu0 0.0
        %1426 = vmatpush2.msra.mxu0 0.0
        %1427 = vmatprep.subr.mxu0 0.0
        %1428 = vmatpush2.msra.mxu0 0.0
        %1429 = vmatprep.subr.mxu0 0.0
        %1430 = vmatpush2.msra.mxu0 0.0
        %1431 = vmatprep.subr.mxu0 0.0
        %1432 = vmatpush2.msra.mxu0 0.0
        %1433 = vmatprep.subr.mxu0 0.0
        %1434 = vmatpush2.msra.mxu0 0.0
        %1435 = vmatprep.subr.mxu0 0.0
        %1436 = vmatpush2.msra.mxu0 0.0
        %1437 = vmatprep.subr.mxu0 0.0
        %1438 = vmatpush2.msra.mxu0 0.0
        %1439 = vmatprep.subr.mxu0 0.0
        %1440 = vmatpush2.msra.mxu0 0.0
        %1441 = vmatprep.subr.mxu0 0.0
        %1442 = vmatpush2.msra.mxu0 0.0
        %1443 = vmatprep.subr.mxu0 0.0
        %1444 = vmatpush2.msra.mxu0 0.0
        %1445 = vmatprep.subr.mxu0 0.0
        %1446 = vmatpush2.msra.mxu0 0.0
        %1447 = vmatprep.subr.mxu0 0.0
        %1448 = vmatpush2.msra.mxu0 0.0
        %1449 = vmatprep.mubr.f32.mxu0 0.0
        %1450 = vmatmul.mubr.f32.gmra.mxu0 %v1345
        %v1451 = vpop.f32.mrf.mxu0
        %v1452 = vadd.f32 0.0, %v1451
        %v1453 = vpop.f32.mrf.mxu0
        %1454 = vdwg.mxu0
        %1455 = vmatprep.subr.mxu0 0.0
        %1456 = vmatpush1.msra.mxu0 %v658
        %1457 = vmatprep.subr.mxu0 0.0
        %1458 = vmatpush1.msra.mxu0 %v657
        %1459 = vmatprep.subr.mxu0 0.0
        %1460 = vmatpush1.msra.mxu0 %v656
        %1461 = vmatprep.subr.mxu0 0.0
        %1462 = vmatpush1.msra.mxu0 %v655
        %1463 = vmatprep.subr.mxu0 0.0
        %1464 = vmatpush1.msra.mxu0 %v654
        %1465 = vmatprep.subr.mxu0 0.0
        %1466 = vmatpush1.msra.mxu0 %v653
        %1467 = vmatprep.subr.mxu0 0.0
        %1468 = vmatpush1.msra.mxu0 %v652
        %1469 = vmatprep.subr.mxu0 0.0
        %1470 = vmatpush1.msra.mxu0 %v651
        %1471 = vmatprep.subr.mxu0 0.0
        %1472 = vmatpush1.msra.mxu0 %v650
        %1473 = vmatprep.subr.mxu0 0.0
        %1474 = vmatpush1.msra.mxu0 %v649
        %1475 = vmatprep.subr.mxu0 0.0
        %1476 = vmatpush1.msra.mxu0 %v648
        %1477 = vmatprep.subr.mxu0 0.0
        %1478 = vmatpush1.msra.mxu0 %v647
        %1479 = vmatprep.subr.mxu0 0.0
        %1480 = vmatpush1.msra.mxu0 %v646
        %1481 = vmatprep.subr.mxu0 0.0
        %1482 = vmatpush1.msra.mxu0 %v645
        %1483 = vmatprep.subr.mxu0 0.0
        %1484 = vmatpush1.msra.mxu0 %v644
        %1485 = vmatprep.subr.mxu0 0.0
        %1486 = vmatpush1.msra.mxu0 %v643
        %1487 = vmatprep.subr.mxu0 0.0
        %1488 = vmatpush2.msra.mxu0 0.0
        %1489 = vmatprep.subr.mxu0 0.0
        %1490 = vmatpush2.msra.mxu0 0.0
        %1491 = vmatprep.subr.mxu0 0.0
        %1492 = vmatpush2.msra.mxu0 0.0
        %1493 = vmatprep.subr.mxu0 0.0
        %1494 = vmatpush2.msra.mxu0 0.0
        %1495 = vmatprep.subr.mxu0 0.0
        %1496 = vmatpush2.msra.mxu0 0.0
        %1497 = vmatprep.subr.mxu0 0.0
        %1498 = vmatpush2.msra.mxu0 0.0
        %1499 = vmatprep.subr.mxu0 0.0
        %1500 = vmatpush2.msra.mxu0 0.0
        %1501 = vmatprep.subr.mxu0 0.0
        %1502 = vmatpush2.msra.mxu0 0.0
        %1503 = vmatprep.subr.mxu0 0.0
        %1504 = vmatpush2.msra.mxu0 0.0
        %1505 = vmatprep.subr.mxu0 0.0
        %1506 = vmatpush2.msra.mxu0 0.0
        %1507 = vmatprep.subr.mxu0 0.0
        %1508 = vmatpush2.msra.mxu0 0.0
        %1509 = vmatprep.subr.mxu0 0.0
        %1510 = vmatpush2.msra.mxu0 0.0
        %1511 = vmatprep.subr.mxu0 0.0
        %1512 = vmatpush2.msra.mxu0 0.0
        %1513 = vmatprep.subr.mxu0 0.0
        %1514 = vmatpush2.msra.mxu0 0.0
        %1515 = vmatprep.subr.mxu0 0.0
        %1516 = vmatpush2.msra.mxu0 0.0
        %1517 = vmatprep.subr.mxu0 0.0
        %1518 = vmatpush2.msra.mxu0 0.0
        %1519 = vmatprep.mubr.f32.mxu0 0.0
        %1520 = vmatmul.mubr.f32.gmra.mxu0 %v1347
        %v1521 = vpop.f32.mrf.mxu0
        %v1522 = vadd.f32 0.0, %v1521
        %v1523 = vpop.f32.mrf.mxu0
        %1524 = vdwg.mxu0
        %v1525 = vadd.f32 %v1383, %v1452
        %v1526 = vadd.f32 %v1384, %v1522
        %vm1527 = vcmask 253952
        %1528 = vst.msk [vmem:[#allocation5] sm:$0x1] %vm1527, %v1525
        %1529 = vst.msk [vmem:[#allocation5 + $0x1] sm:$0x1] %vm1527, %v1526
        %1530 = vst.msk [vmem:[#allocation3] sm:$0x1] %vm1360, %v1316
        %1531 = vst.msk [vmem:[#allocation3 + $0x1] sm:$0x1] %vm1360, %v1317
        %p1532 = scmp.eq.s32.totalorder %s30, 1
        // Predicated region
        $region103: #{tpu_custom_call.1} parent=93 // pred_check
          %p1533 = pneg %p1532
        $region104: #{tpu_custom_call.1} parent=93 // pred_check_branch
          %1535 = sbr.rel (%p1533) target = $region106
        $region105: #{tpu_custom_call.1} parent=93 // pred_region
          %v1536 = vld [vmem:[#allocation4] sm:$0x1]
          %v1537 = vld [vmem:[#allocation4 + $0x1] sm:$0x1]
          %v1538 = vrcp.pop %v1536
          %v1539 = vrcp.pop %v1537
          %v1540 = vmul.f32 %v1536, %v1538
          %v1541 = vmul.f32 %v1537, %v1539
          %v1542 = vsub.f32 2.0, %v1540
          %v1543 = vsub.f32 2.0, %v1541
          %v1544 = vmul.f32 %v1538, %v1542
          %v1545 = vmul.f32 %v1539, %v1543
          %v1546 = vld [vmem:[#allocation3] sm:$0x1]
          %v1547 = vld [vmem:[#allocation3 + $0x1] sm:$0x1]
          %v1548 = vld [vmem:[#allocation2] sm:$0x1]
          %v1549 = vld [vmem:[#allocation2 + $0x1] sm:$0x1]
          %1551 = vset.pattern.permute.xlu0 0
          %1552 = vperm.xlu0 %1551, %v1546
          %v1553 = vpop.permute.xlu0 %1552
          %v1555 = vlaneseq
          %v1556 = vshrl.u32 %v1555, 7
          %v1557 = vsub.s32 0, %v1556
          %v1558 = vrot.slane %v1553, %v1557
          %1560 = vset.pattern.permute.xlu0 0
          %1561 = vperm.xlu0 %1560, %v1547
          %v1562 = vpop.permute.xlu0 %1561
          %v1564 = vlaneseq
          %v1565 = vshrl.u32 %v1564, 7
          %v1566 = vsub.s32 0, %v1565
          %v1567 = vrot.slane %v1562, %v1566
          %v1568 = vsub.f32 %v1548, %v1558
          %v1569 = vsub.f32 %v1549, %v1567
          %v1570 = vmul.f32 %v1568, 1.442695
          %v1571 = vpow.pop %v1570
          %v1572 = vmul.f32 %v1569, 1.442695
          %v1573 = vpow.pop %v1572
          %1575 = vset.pattern.permute.xlu0 0
          %1576 = vperm.xlu0 %1575, %v1544
          %v1577 = vpop.permute.xlu0 %1576
          %v1579 = vlaneseq
          %v1580 = vshrl.u32 %v1579, 7
          %v1581 = vsub.s32 0, %v1580
          %v1582 = vrot.slane %v1577, %v1581
          %1584 = vset.pattern.permute.xlu0 0
          %1585 = vperm.xlu0 %1584, %v1545
          %v1586 = vpop.permute.xlu0 %1585
          %v1588 = vlaneseq
          %v1589 = vshrl.u32 %v1588, 7
          %v1590 = vsub.s32 0, %v1589
          %v1591 = vrot.slane %v1586, %v1590
          %v1592 = vmul.f32 %v1571, %v1582
          %v1593 = vmul.f32 %v1573, %v1591
          %v1594 = vlaneseq
          %vm1595 = vcmp.ge.s32.totalorder %v1594, 0
          %vm1596 = vcmp.lt.s32.totalorder %v1594, 128
          %vm1597 = vmand %vm1595, %vm1596
          %1598 = vst.msk [vmem:[#allocation9] sm:$0x1] %vm1597, %v1592
          %1599 = vst.msk [vmem:[#allocation9 + $0x2] sm:$0x1] %vm1597, %v1593
          %s1600 = scalar_lea.vmem [#allocation2], 2
          %v1601 = vld [vmem:[%s1600] sm:$0x1]
          %v1602 = vld [vmem:[%s1600 + $0x1] sm:$0x1]
          %v1603 = vsub.f32 %v1601, %v1558
          %v1604 = vsub.f32 %v1602, %v1567
          %v1605 = vmul.f32 %v1603, 1.442695
          %v1606 = vpow.pop %v1605
          %v1607 = vmul.f32 %v1604, 1.442695
          %v1608 = vpow.pop %v1607
          %v1609 = vmul.f32 %v1606, %v1582
          %v1610 = vmul.f32 %v1608, %v1591
          %1611 = vst.msk [vmem:[#allocation9 + $0x1] sm:$0x1] %vm1597, %v1609
          %1612 = vst.msk [vmem:[#allocation9 + $0x3] sm:$0x1] %vm1597, %v1610
          %v1613 = vld [vmem:[#allocation5] sm:$0x1]
          %v1614 = vld [vmem:[#allocation5 + $0x1] sm:$0x1]
          %v1615 = vmul.f32 %v1613, %v1582
          %v1616 = vmul.f32 %v1614, %v1591
          %v1618 = vlaneseq
          %v1619 = vshrl.u32 %v1618, 7
          %v1620 = vsub.s32 0, %v1619
          %v1621 = vrot.slane %v1616, %v1620
          %v1623 = vsel %vm1309, %v1615, %v1621
          %v1624 = vld [vmem:[%s613] sm:$0x3]
          %1626 = vrot.lane.b32.xlu0 %v1624, 32
          %v1627 = vpop.permute.xlu0 %1626
          %v1629 = vsel %vm663, %v1623, %v1627
          %v1630 = vld [vmem:[%s609] sm:$0x3]
          %v1631 = vld [vmem:[%s6] sm:$0xff]
          %v1632 = vld [vmem:[%s6 + $0x8] sm:$0xff]
          %v1633 = vld [vmem:[%s6 + $0x10] sm:$0xff]
          %v1634 = vld [vmem:[%s6 + $0x18] sm:$0xff]
          %v1635 = vld [vmem:[%s6 + $0x20] sm:$0xff]
          %v1636 = vld [vmem:[%s8] sm:$0x1]
          %v1638 = vlaneseq
          %v1639 = vshrl.u32 %v1638, 7
          %v1640 = vsub.s32 0, %v1639
          %v1641 = vrot.slane %v1636, %v1640
          %vm1643 = vcmask 326656
          %v1645 = vsel %vm1643, %v1629, 0
          %1647 = vmatprep.subr.mxu0 0.0
          %1648 = vmatpush1.msra.mxu0 0.0
          %1649 = vmatprep.subr.mxu0 0.0
          %1650 = vmatpush1.msra.mxu0 0.0
          %1651 = vmatprep.subr.mxu0 0.0
          %1652 = vmatpush1.msra.mxu0 0.0
          %1653 = vmatprep.subr.mxu0 0.0
          %1654 = vmatpush1.msra.mxu0 0.0
          %1655 = vmatprep.subr.mxu0 0.0
          %1656 = vmatpush1.msra.mxu0 0.0
          %1657 = vmatprep.subr.mxu0 0.0
          %1658 = vmatpush1.msra.mxu0 0.0
          %1659 = vmatprep.subr.mxu0 0.0
          %1660 = vmatpush1.msra.mxu0 0.0
          %1661 = vmatprep.subr.mxu0 0.0
          %1662 = vmatpush1.msra.mxu0 0.0
          %1663 = vmatprep.subr.mxu0 0.0
          %1664 = vmatpush1.msra.mxu0 0.0
          %1665 = vmatprep.subr.mxu0 0.0
          %1666 = vmatpush1.msra.mxu0 0.0
          %1667 = vmatprep.subr.mxu0 0.0
          %1668 = vmatpush1.msra.mxu0 0.0
          %1669 = vmatprep.subr.mxu0 0.0
          %1670 = vmatpush1.msra.mxu0 %v1635
          %1671 = vmatprep.subr.mxu0 0.0
          %1672 = vmatpush1.msra.mxu0 %v1634
          %1673 = vmatprep.subr.mxu0 0.0
          %1674 = vmatpush1.msra.mxu0 %v1633
          %1675 = vmatprep.subr.mxu0 0.0
          %1676 = vmatpush1.msra.mxu0 %v1632
          %1677 = vmatprep.subr.mxu0 0.0
          %1678 = vmatpush1.msra.mxu0 %v1631
          %1679 = vmatprep.subr.mxu0 0.0
          %1680 = vmatpush2.msra.mxu0 0.0
          %1681 = vmatprep.subr.mxu0 0.0
          %1682 = vmatpush2.msra.mxu0 0.0
          %1683 = vmatprep.subr.mxu0 0.0
          %1684 = vmatpush2.msra.mxu0 0.0
          %1685 = vmatprep.subr.mxu0 0.0
          %1686 = vmatpush2.msra.mxu0 0.0
          %1687 = vmatprep.subr.mxu0 0.0
          %1688 = vmatpush2.msra.mxu0 0.0
          %1689 = vmatprep.subr.mxu0 0.0
          %1690 = vmatpush2.msra.mxu0 0.0
          %1691 = vmatprep.subr.mxu0 0.0
          %1692 = vmatpush2.msra.mxu0 0.0
          %1693 = vmatprep.subr.mxu0 0.0
          %1694 = vmatpush2.msra.mxu0 0.0
          %1695 = vmatprep.subr.mxu0 0.0
          %1696 = vmatpush2.msra.mxu0 0.0
          %1697 = vmatprep.subr.mxu0 0.0
          %1698 = vmatpush2.msra.mxu0 0.0
          %1699 = vmatprep.subr.mxu0 0.0
          %1700 = vmatpush2.msra.mxu0 0.0
          %1701 = vmatprep.subr.mxu0 0.0
          %1702 = vmatpush2.msra.mxu0 0.0
          %1703 = vmatprep.subr.mxu0 0.0
          %1704 = vmatpush2.msra.mxu0 0.0
          %1705 = vmatprep.subr.mxu0 0.0
          %1706 = vmatpush2.msra.mxu0 0.0
          %1707 = vmatprep.subr.mxu0 0.0
          %1708 = vmatpush2.msra.mxu0 0.0
          %1709 = vmatprep.subr.mxu0 0.0
          %1710 = vmatpush2.msra.mxu0 0.0
          %1711 = vmatprep.mubr.f32.mxu0 0.0
          %1712 = vmatmul.mubr.f32.gmra.mxu0 %v1645
          %v1713 = vpop.f32.mrf.mxu0
          %v1714 = vadd.f32 %v1641, %v1713
          %v1715 = vpop.f32.mrf.mxu0
          %1716 = vdwg.mxu0
          %v1717 = vld [vmem:[%s7] sm:$0xff]
          %v1718 = vld [vmem:[%s7 + $0x8] sm:$0xff]
          %v1719 = vld [vmem:[%s7 + $0x10] sm:$0xff]
          %v1720 = vld [vmem:[%s7 + $0x18] sm:$0xff]
          %v1721 = vld [vmem:[%s9] sm:$0x1]
          %v1723 = vlaneseq
          %v1724 = vshrl.u32 %v1723, 7
          %v1725 = vsub.s32 0, %v1724
          %v1726 = vrot.slane %v1721, %v1725
          %v1729 = vsel %vm663, %v1630, 0
          %1731 = vmatprep.subr.mxu0 0.0
          %1732 = vmatpush1.msra.mxu0 0.0
          %1733 = vmatprep.subr.mxu0 0.0
          %1734 = vmatpush1.msra.mxu0 0.0
          %1735 = vmatprep.subr.mxu0 0.0
          %1736 = vmatpush1.msra.mxu0 0.0
          %1737 = vmatprep.subr.mxu0 0.0
          %1738 = vmatpush1.msra.mxu0 0.0
          %1739 = vmatprep.subr.mxu0 0.0
          %1740 = vmatpush1.msra.mxu0 0.0
          %1741 = vmatprep.subr.mxu0 0.0
          %1742 = vmatpush1.msra.mxu0 0.0
          %1743 = vmatprep.subr.mxu0 0.0
          %1744 = vmatpush1.msra.mxu0 0.0
          %1745 = vmatprep.subr.mxu0 0.0
          %1746 = vmatpush1.msra.mxu0 0.0
          %1747 = vmatprep.subr.mxu0 0.0
          %1748 = vmatpush1.msra.mxu0 0.0
          %1749 = vmatprep.subr.mxu0 0.0
          %1750 = vmatpush1.msra.mxu0 0.0
          %1751 = vmatprep.subr.mxu0 0.0
          %1752 = vmatpush1.msra.mxu0 0.0
          %1753 = vmatprep.subr.mxu0 0.0
          %1754 = vmatpush1.msra.mxu0 0.0
          %1755 = vmatprep.subr.mxu0 0.0
          %1756 = vmatpush1.msra.mxu0 %v1720
          %1757 = vmatprep.subr.mxu0 0.0
          %1758 = vmatpush1.msra.mxu0 %v1719
          %1759 = vmatprep.subr.mxu0 0.0
          %1760 = vmatpush1.msra.mxu0 %v1718
          %1761 = vmatprep.subr.mxu0 0.0
          %1762 = vmatpush1.msra.mxu0 %v1717
          %1763 = vmatprep.subr.mxu0 0.0
          %1764 = vmatpush2.msra.mxu0 0.0
          %1765 = vmatprep.subr.mxu0 0.0
          %1766 = vmatpush2.msra.mxu0 0.0
          %1767 = vmatprep.subr.mxu0 0.0
          %1768 = vmatpush2.msra.mxu0 0.0
          %1769 = vmatprep.subr.mxu0 0.0
          %1770 = vmatpush2.msra.mxu0 0.0
          %1771 = vmatprep.subr.mxu0 0.0
          %1772 = vmatpush2.msra.mxu0 0.0
          %1773 = vmatprep.subr.mxu0 0.0
          %1774 = vmatpush2.msra.mxu0 0.0
          %1775 = vmatprep.subr.mxu0 0.0
          %1776 = vmatpush2.msra.mxu0 0.0
          %1777 = vmatprep.subr.mxu0 0.0
          %1778 = vmatpush2.msra.mxu0 0.0
          %1779 = vmatprep.subr.mxu0 0.0
          %1780 = vmatpush2.msra.mxu0 0.0
          %1781 = vmatprep.subr.mxu0 0.0
          %1782 = vmatpush2.msra.mxu0 0.0
          %1783 = vmatprep.subr.mxu0 0.0
          %1784 = vmatpush2.msra.mxu0 0.0
          %1785 = vmatprep.subr.mxu0 0.0
          %1786 = vmatpush2.msra.mxu0 0.0
          %1787 = vmatprep.subr.mxu0 0.0
          %1788 = vmatpush2.msra.mxu0 0.0
          %1789 = vmatprep.subr.mxu0 0.0
          %1790 = vmatpush2.msra.mxu0 0.0
          %1791 = vmatprep.subr.mxu0 0.0
          %1792 = vmatpush2.msra.mxu0 0.0
          %1793 = vmatprep.subr.mxu0 0.0
          %1794 = vmatpush2.msra.mxu0 0.0
          %1795 = vmatprep.mubr.f32.mxu0 0.0
          %1796 = vmatmul.mubr.f32.gmra.mxu0 %v1729
          %v1797 = vpop.f32.mrf.mxu0
          %v1798 = vadd.f32 %v1726, %v1797
          %v1799 = vpop.f32.mrf.mxu0
          %1800 = vdwg.mxu0
          %v1801 = vadd.f32 %v1714, %v1798
          %v1802 = vxor.u32 %v1801, 2147483648
          %v1803 = vmul.f32 %v1802, 1.442695
          %v1804 = vpow.pop %v1803
          %v1805 = vadd.f32 %v1804, 1.0
          %v1806 = vrcp.pop %v1805
          %v1807 = vmul.f32 1.0, %v1806
          %1809 = vrot.lane.b32.xlu0 %v1798, 64
          %v1810 = vpop.permute.xlu0 %1809
          %v1812 = vmul.f32 %v1807, %v1810
          %1814 = vrot.lane.b32.xlu0 %v1812, 64
          %v1815 = vpop.permute.xlu0 %1814
          %v1817 = vadd.f32 %v1714, %v1815
          %v1818 = vtanh.pop %v1817
          %v1819 = vsub.f32 1.0, %v1807
          %1821 = vrot.lane.b32.xlu0 %v1818, 96
          %v1822 = vpop.permute.xlu0 %1821
          %v1824 = vmul.f32 %v1819, %v1822
          %1825 = vrot.lane.b32.xlu0 %v1630, 32
          %v1826 = vpop.permute.xlu0 %1825
          %v1828 = vmul.f32 %v1807, %v1826
          %v1829 = vadd.f32 %v1824, %v1828
          %1831 = vrot.lane.b32.xlu0 %v1829, 96
          %v1832 = vpop.permute.xlu0 %1831
          %vm1834 = vcmask 254976
          %1835 = vst.msk [vmem:[#allocation7] sm:$0x3] %vm1834, %v1832
        $region106: #{tpu_custom_call.1} parent=93 // pred_fallthru
          _
        // Predicated region
        $region107: #{tpu_custom_call.1} parent=93 // pred_check
          %p1836 = pneg %p287
        $region108: #{tpu_custom_call.1} parent=93 // pred_check_branch
          %1838 = sbr.rel (%p1836) target = $region110
        $region109: #{tpu_custom_call.1} parent=93 // pred_region
          %s1840 = ssub.s32 32, 32
          %1841 = vsyncadd [#allocation8], %s1840
          %s1842 = smul.addr %s29, 32
          %s1843 = scalar_lea.hbm %s10, %s1842
          %s1845 = sshll.u32 [#allocation7], 4
          %s1846 = int_to_ptr.vmem [resolvable:$true] %s1845
          %1848 = dma.vmem_to_hbm [thread:$0]  %s1846, 32, %s1843, [#allocation8]
        $region110: #{tpu_custom_call.1} parent=93 // pred_fallthru
          _
        // Predicated region
        $region111: #{tpu_custom_call.1} parent=93 // pred_check
          %p1849 = pneg %p313
        $region112: #{tpu_custom_call.1} parent=93 // pred_check_branch
          %1851 = sbr.rel (%p1849) target = $region114
        $region113: #{tpu_custom_call.1} parent=93 // pred_region
          %s1852 = smul.u32 2, %s29
          %s1854 = ssub.s32 64, 64
          %1855 = vsyncadd [#allocation10], %s1854
          %s1856 = smul.addr %s1852, 2
          %s1857 = smul.addr %s1856, 16
          %s1858 = scalar_lea.hbm %s11, %s1857
          %s1859 = sshll.u32 [#allocation9], 4
          %s1860 = int_to_ptr.vmem [resolvable:$true] %s1859
          %1865 = dma.vmem_to_hbm [thread:$0]  %s1860, 64, %s1858, [#allocation10], 32, 32, 2
        $region114: #{tpu_custom_call.1} parent=93 // pred_fallthru
          _
        // Predicated region
        $region115: #{tpu_custom_call.1} parent=93 // pred_check
          %p1866 = pneg %p287
        $region116: #{tpu_custom_call.1} parent=93 // pred_check_branch
          %1868 = sbr.rel (%p1866) target = $region118
        $region117: #{tpu_custom_call.1} parent=93 // pred_region
          %1869 = dma.done [#allocation8], 32
        $region118: #{tpu_custom_call.1} parent=93 // pred_fallthru
          _
        // Predicated region
        $region119: #{tpu_custom_call.1} parent=93 // pred_check
          %p1870 = pneg %p313
        $region120: #{tpu_custom_call.1} parent=93 // pred_check_branch
          %1872 = sbr.rel (%p1870) target = $region122
        $region121: #{tpu_custom_call.1} parent=93 // pred_region
          %1873 = dma.done [#allocation10], 64
        $region122: #{tpu_custom_call.1} parent=93 // pred_fallthru
          _
      $region94: #{tpu_custom_call.1} parent=5 // pred_fallthru
        _
      %p1874 = scmp.le.s32.totalorder 2, %s20
      // Predicated region
      $region123: #{tpu_custom_call.1} parent=5 // pred_check
        %p1875 = pneg %p1874
      $region124: #{tpu_custom_call.1} parent=5 // pred_check_branch
        %1877 = sbr.rel (%p1875) target = $region126
      $region125: #{tpu_custom_call.1} parent=5 // pred_region
        %s1878 = ssub.s32 %s20, 2
      $region126: #{tpu_custom_call.1} parent=5 // pred_fallthru
        _
    $region6: #{tpu_custom_call.1} parent=1 // loop_footer
      %s24 = sadd.s32 1, %s20
    $region7: #{tpu_custom_call.1} parent=1 // loop_footer_branch
      %19 = sbr.rel target = $region3
    $region8: #{tpu_custom_call.1} parent=1 // loop_exit
      _
    %1879 = vsyncpa [#allocation8], 1
    %s1880 = scalar_lea.sflag [#allocation8], 1
    %1881 = vsyncpa %s1880, 1
    %1882 = vsyncpa [#allocation10], 1

</llo_original>
